<compile_context>
chip_gen: v6e
topology: v6e:2x2x1
jax: 0.10.0
libtpu: 0.0.40
codegen_flags: <defaults>
</compile_context>

<pallas_src>
import functools

import jax
import jax.numpy as jnp
from jax import lax
from jax.experimental import pallas as pl
from jax.experimental.pallas import tpu as pltpu


def _unet_down_kernel(x_ref, w_ref, b_ref, gamma_ref, beta_ref, cmask_ref,
                      grp_ref, grpT_ref, a_ref, o_ref, *,
                      K, L, pad, factor, Nb, cout_true, groups,
                      same_channels, per_tap, use_roll, gn_eps):
    # x_ref    : (Cin_p, Nb*L)          lane-dense input slab (channels x samples*length)
    # w_ref    : per_tap -> (K, Cout_p, Cin_p) ; fused -> (Cout_p, K*Cin_p)
    # b/gamma/beta_ref : (Cout_p, 1)
    # cmask_ref: (K, Nb*L)              per-tap 'same'-padding validity mask (0/1)
    # grp_ref  : (Cout_p, G)            one-hot group -> channel broadcast (0 rows for pad ch)
    # grpT_ref : (G, Cout_p)            one-hot channel -> group reduce (0 cols for pad ch)
    # a_ref    : (1, 1) SMEM            PReLU slope
    # o_ref    : (Cout_p, Nb*lp)        pooled output slab
    f32 = jnp.float32
    NbL = Nb * L
    lp = L // factor

    xb = x_ref[...].astype(f32)                       # (Cin_p, NbL)
    cin_p = xb.shape[0]
    cmask = cmask_ref[...]                            # (K, NbL)
    bias = b_ref[...]                                 # (Cout_p, 1)
    gamma = gamma_ref[...]
    beta = beta_ref[...]
    grp = grp_ref[...]                                # (Cout_p, G)
    grpT = grpT_ref[...]                              # (G, Cout_p)
    a = a_ref[0, 0]

    def tap_slab(t):
        # shifted[:, j] = xb[:, j + (t - pad)], with out-of-sample lanes zeroed.
        s = t - pad
        if s == 0:
            return xb
        if use_roll:
            # XLU rotation; the boundary mask zeroes every wrapped / cross-sample lane.
            shifted = pltpu.roll(xb, shift=(-s) % NbL, axis=1)
        elif s > 0:
            shifted = jnp.concatenate(
                [xb[:, s:], jnp.zeros((cin_p, s), f32)], axis=1)
        else:
            shifted = jnp.concatenate(
                [jnp.zeros((cin_p, -s), f32), xb[:, :NbL + s]], axis=1)
        return shifted * cmask[t:t + 1, :]

    # ---- Conv1d (stride 1, 'same') on the MXU ----
    if per_tap:
        # Large channels: K accumulated matmuls, no explicit im2col slab in VMEM.
        conv = jnp.dot(w_ref[0], tap_slab(0), preferred_element_type=f32)
        for t in range(1, K):
            conv = conv + jnp.dot(w_ref[t], tap_slab(t),
                                  preferred_element_type=f32)
    else:
        # Small channels: one fused contraction of depth K*Cin_p.
        rhs = jnp.concatenate([tap_slab(t) for t in range(K)], axis=0)
        conv = jnp.dot(w_ref[...], rhs, preferred_element_type=f32)
    conv = conv + bias                                # (Cout_p, NbL)
    cout_p = conv.shape[0]

    inv_cnt = 1.0 / float((cout_true // groups) * L)

    # ---- per-sample GroupNorm + PReLU (+ residual) + MaxPool ----
    # Stats are lane reductions + tiny (G, Cout_p) matmuls; the broadcast back is
    # plain column broadcasting (no conv-sized one-hot matmuls).
    for n in range(Nb):                               # Nb is small & static
        c = conv[:, n * L:(n + 1) * L]                # (Cout_p, L)
        s1 = jnp.sum(c, axis=-1, keepdims=True)       # (Cout_p, 1)
        mu = jnp.dot(grp, jnp.dot(grpT, s1, preferred_element_type=f32),
                     preferred_element_type=f32) * inv_cnt       # (Cout_p, 1)
        cent = c - mu
        s2 = jnp.sum(cent * cent, axis=-1, keepdims=True)        # (Cout_p, 1)
        var = jnp.dot(grpT, s2, preferred_element_type=f32) * inv_cnt  # (G, 1)
        inv = lax.rsqrt(var + gn_eps)                             # (G, 1)
        scale = gamma * jnp.dot(grp, inv, preferred_element_type=f32)  # (Cout_p, 1)
        y = cent * scale + beta
        y = jnp.where(y >= 0.0, y, a * y)             # PReLU (shared slope)
        if same_channels:
            y = (xb[:, n * L:(n + 1) * L] + y) * 0.5  # residual branch
        # MaxPool1d(kernel=factor, stride=factor) within the sample.
        pooled = jnp.max(y.reshape(cout_p, lp, factor), axis=-1)
        o_ref[:, n * lp:(n + 1) * lp] = pooled.astype(o_ref.dtype)


def _round_up(v, m):
    return ((v + m - 1) // m) * m


def _vmem_capacity_bytes():
    try:
        info = pltpu.get_tpu_info()
        cap = getattr(info, "vmem_capacity_bytes", None)
        if cap:
            return int(cap)
    except Exception:
        pass
    return 64 << 20   # conservative (v7x-sized) fallback


def _pick_batch_block(N, L, lp, target_lanes, max_nb=64):
    """Largest per-step batch block Nb that (a) divides N, (b) keeps the in/out
    lane widths 128-aligned unless it covers the whole batch, (c) fits the lane
    budget, and (d) keeps the grid >= 2 when possible (v7x megacore)."""
    def legal(nb):
        if N % nb:
            return False
        return nb == N or ((nb * L) % 128 == 0 and (nb * lp) % 128 == 0)

    cands = [nb for nb in range(1, N + 1) if legal(nb)]

    def fits(nb):
        return nb * L <= target_lanes and nb <= max_nb

    multi = [nb for nb in cands if N // nb >= 2 and fits(nb)]
    if multi:
        return max(multi)
    fit = [nb for nb in cands if fits(nb)]
    if fit:
        return max(fit)
    return min(cands)


def unet_down(x, w, b, gamma, beta, prelu_a, *, groups=8, factor=2):
    """x: (N, Cin, L); w: (Cout, Cin, K); b/gamma/beta: (Cout,); prelu_a: scalar."""
    N, cin, L = x.shape
    cout, cin_w, K = w.shape
    assert cin == cin_w and cout % groups == 0 and L % factor == 0
    assert K % 2 == 1, "stride-1 'same' conv assumes odd kernel size"
    pad = (K - 1) // 2
    lp = L // factor
    f32 = jnp.float32

    cin_p = _round_up(cin, 8)
    cout_p = _round_up(cout, 8)
    per_tap = (K * cin_p) >= 128      # skip the explicit im2col slab for big channels

    # ---- generation-aware VMEM budget -> lane budget -> batch block ----
    vmem_cap = _vmem_capacity_bytes()
    vmem_limit = min(int(0.7 * vmem_cap), 100 << 20)
    rhs_lanes = (2 * cin_p) if per_tap else (K * cin_p)
    per_lane = 4 * (2 * cin_p + rhs_lanes + 3 * cout_p + 2 * (cout_p // factor))
    target_lanes = max(L, min(8192, (vmem_limit // 2) // per_lane))
    Nb = _pick_batch_block(N, L, lp, target_lanes)
    NbL = Nb * L
    grid = (N // Nb,)
    use_roll = (NbL % 128 == 0)
    vmem_limit = max(vmem_limit, per_lane * NbL + (8 << 20))
    vmem_limit = int(min(vmem_limit, int(0.95 * vmem_cap)))

    # ---- one-time parameter prep (hoisted out of the kernel) ----
    ws_eps = 1e-5 if x.dtype == jnp.float32 else 1e-3
    w32 = w.astype(f32)
    w_mean = jnp.mean(w32, axis=(1, 2), keepdims=True)
    w_var = jnp.mean((w32 - w_mean) ** 2, axis=(1, 2), keepdims=True)
    w_std = (w32 - w_mean) * lax.rsqrt(w_var + ws_eps)           # (Cout, Cin, K)
    w_std = jnp.pad(w_std, ((0, cout_p - cout), (0, cin_p - cin), (0, 0)))
    if per_tap:
        w_arg = jnp.transpose(w_std, (2, 0, 1))                  # (K, Cout_p, Cin_p)
        w_spec = pl.BlockSpec((K, cout_p, cin_p), lambda i: (0, 0, 0))
    else:
        w_arg = jnp.transpose(w_std, (0, 2, 1)).reshape(cout_p, K * cin_p)
        w_spec = pl.BlockSpec((cout_p, K * cin_p), lambda i: (0, 0))

    b2 = jnp.pad(b.astype(f32), (0, cout_p - cout)).reshape(cout_p, 1)
    g2 = jnp.pad(gamma.astype(f32), (0, cout_p - cout)).reshape(cout_p, 1)
    be2 = jnp.pad(beta.astype(f32), (0, cout_p - cout)).reshape(cout_p, 1)
    a2 = jnp.asarray(prelu_a, f32).reshape(1, 1)

    # lane-dense input slab (Cin_p, N*L): samples concatenated along lanes.
    xt = jnp.transpose(x, (1, 0, 2)).reshape(cin, N * L)
    if cin_p != cin:
        xt = jnp.pad(xt, ((0, cin_p - cin), (0, 0)))

    # per-tap 'same'-padding validity mask (also zeroes roll wrap-around lanes).
    l_in = jnp.arange(NbL, dtype=jnp.int32) % L
    shifts = jnp.arange(K, dtype=jnp.int32) - pad
    cmask = ((l_in[None, :] + shifts[:, None] >= 0) &
             (l_in[None, :] + shifts[:, None] <= L - 1)).astype(f32)   # (K, NbL)

    # channel<->group one-hots; padded output channels are excluded from stats.
    cpg = cout // groups
    gidx = jnp.arange(cout_p, dtype=jnp.int32) // cpg
    real = jnp.arange(cout_p, dtype=jnp.int32) < cout
    grp = ((gidx[:, None] == jnp.arange(groups, dtype=jnp.int32)[None, :]) &
           real[:, None]).astype(f32)                                   # (Cout_p, G)
    grpT = jnp.transpose(grp)                                           # (G, Cout_p)

    kernel = functools.partial(
        _unet_down_kernel, K=K, L=L, pad=pad, factor=factor, Nb=Nb,
        cout_true=cout, groups=groups, same_channels=(cin == cout),
        per_tap=per_tap, use_roll=use_roll, gn_eps=1e-5)

    out = pl.pallas_call(
        kernel,
        out_shape=jax.ShapeDtypeStruct((cout_p, N * lp), x.dtype),
        grid=grid,
        in_specs=[
            pl.BlockSpec((cin_p, NbL), lambda i: (0, i)),
            w_spec,
            pl.BlockSpec((cout_p, 1), lambda i: (0, 0)),
            pl.BlockSpec((cout_p, 1), lambda i: (0, 0)),
            pl.BlockSpec((cout_p, 1), lambda i: (0, 0)),
            pl.BlockSpec((K, NbL), lambda i: (0, 0)),
            pl.BlockSpec((cout_p, groups), lambda i: (0, 0)),
            pl.BlockSpec((groups, cout_p), lambda i: (0, 0)),
            pl.BlockSpec((1, 1), lambda i: (0, 0),
                         memory_space=pltpu.MemorySpace.SMEM),
        ],
        out_specs=pl.BlockSpec((cout_p, Nb * lp), lambda i: (0, i)),
        compiler_params=pltpu.CompilerParams(
            dimension_semantics=("parallel",),
            vmem_limit_bytes=vmem_limit),
    )(xt, w_arg, b2, g2, be2, cmask, grp, grpT, a2)

    # lane-dense (Cout_p, N*lp) -> (N, Cout, lp)  (wrapper-side layout plumbing)
    out = out[:cout].reshape(cout, N, lp)
    return jnp.transpose(out, (1, 0, 2))


def unet_down_ref(x, w, b, gamma, beta, prelu_a, *, groups=8, factor=2):
    """Pure-JAX reference of the PyTorch forward pass (for validation)."""
    ws_eps = 1e-5 if x.dtype == jnp.float32 else 1e-3
    mean = jnp.mean(w, axis=(1, 2), keepdims=True)
    var = jnp.mean((w - mean) ** 2, axis=(1, 2), keepdims=True)
    wn = (w - mean) * lax.rsqrt(var + ws_eps)
    pad = (w.shape[-1] - 1) // 2
    y = lax.conv_general_dilated(
        x, wn, window_strides=(1,), padding=[(pad, pad)],
        dimension_numbers=("NCH", "OIH", "NCH"))
    y = y + b[None, :, None]
    N, C, L = y.shape
    h = y.reshape(N, groups, C // groups, L)
    mu = jnp.mean(h, axis=(2, 3), keepdims=True)
    hv = jnp.mean((h - mu) ** 2, axis=(2, 3), keepdims=True)
    h = (h - mu) * lax.rsqrt(hv + 1e-5)
    y = h.reshape(N, C, L) * gamma[None, :, None] + beta[None, :, None]
    y = jnp.where(y >= 0, y, prelu_a * y)
    if x.shape[1] == C:
        y = (x + y) / 2
    return jnp.max(y.reshape(N, C, L // factor, factor), axis=-1)


if __name__ == "__main__":
    def run_case(key, N, Cin, Cout, L, K, G, F):
        k1, k2, k3, k4, k5 = jax.random.split(key, 5)
        x = jax.random.normal(k1, (N, Cin, L), jnp.float32)
        w = 0.2 * jax.random.normal(k2, (Cout, Cin, K), jnp.float32)
        b = 0.1 * jax.random.normal(k3, (Cout,), jnp.float32)
        gamma = 1.0 + 0.1 * jax.random.normal(k4, (Cout,), jnp.float32)
        beta = 0.1 * jax.random.normal(k5, (Cout,), jnp.float32)
        a = jnp.float32(0.25)
        out = unet_down(x, w, b, gamma, beta, a, groups=G, factor=F)
        out = jax.block_until_ready(out)
        ref = unet_down_ref(x, w, b, gamma, beta, a, groups=G, factor=F)
        assert out.shape == (N, Cout, L // F), out.shape
        err = float(jnp.max(jnp.abs(out - ref)))
        assert jnp.allclose(out, ref, rtol=1e-4, atol=1e-4), err

    key = jax.random.PRNGKey(0)
    k1, k2, k3, k4 = jax.random.split(key, 4)
    # UnetDown(in_channels=4, out_channels=8, kernel_size=3, gn=8, factor=2)
    run_case(k1, N=2, Cin=4, Cout=8, L=16, K=3, G=8, F=2)
    # same-channel case (exercises the residual branch)
    run_case(k2, N=2, Cin=8, Cout=8, L=16, K=3, G=8, F=2)
    # larger channels: exercises the per-tap conv, roll-based halo, grid >= 2
    run_case(k3, N=4, Cin=64, Cout=64, L=256, K=3, G=8, F=2)
    # K=5 and Cout not a multiple of 8: exercises channel padding + masked stats
    run_case(k4, N=2, Cin=4, Cout=12, L=16, K=5, G=4, F=2)
    print("KERNEL_OK")
</pallas_src>

<mosaic_0001>
module attributes {stable_mosaic.version = 11 : i64} {
  func.func @_unet_down_kernel(%arg0: i32, %arg1: memref<8x32xf32, #tpu.memory_space<vmem>>, %arg2: memref<8x24xf32, #tpu.memory_space<vmem>>, %arg3: memref<8x1xf32, #tpu.memory_space<vmem>>, %arg4: memref<8x1xf32, #tpu.memory_space<vmem>>, %arg5: memref<8x1xf32, #tpu.memory_space<vmem>>, %arg6: memref<3x32xf32, #tpu.memory_space<vmem>>, %arg7: memref<8x8xf32, #tpu.memory_space<vmem>>, %arg8: memref<8x8xf32, #tpu.memory_space<vmem>>, %arg9: memref<1x1xf32, #tpu.memory_space<smem>>, %arg10: memref<8x16xf32, #tpu.memory_space<vmem>>) attributes {dimension_semantics = [#tpu.dimension_semantics<parallel>], iteration_bounds = array<i64: 1>, scalar_prefetch = 0 : i64, scratch_operands = 0 : i64, tpu.core_type = #tpu.core_type<tc>, window_params = [{transform_indices = @transform_0, window_bounds = array<i64: 8, 32>}, {pipeline_mode = #tpu.pipeline_mode<synchronous>, transform_indices = @transform_1, window_bounds = array<i64: 8, 24>}, {pipeline_mode = #tpu.pipeline_mode<synchronous>, transform_indices = @transform_2, window_bounds = array<i64: 8, 1>}, {pipeline_mode = #tpu.pipeline_mode<synchronous>, transform_indices = @transform_3, window_bounds = array<i64: 8, 1>}, {pipeline_mode = #tpu.pipeline_mode<synchronous>, transform_indices = @transform_4, window_bounds = array<i64: 8, 1>}, {pipeline_mode = #tpu.pipeline_mode<synchronous>, transform_indices = @transform_5, window_bounds = array<i64: 3, 32>}, {pipeline_mode = #tpu.pipeline_mode<synchronous>, transform_indices = @transform_6, window_bounds = array<i64: 8, 8>}, {pipeline_mode = #tpu.pipeline_mode<synchronous>, transform_indices = @transform_7, window_bounds = array<i64: 8, 8>}, {transform_indices = @transform_8, window_bounds = array<i64: 1, 1>}, {transform_indices = @transform_9, window_bounds = array<i64: 8, 16>}]} {
    %c0 = arith.constant 0 : index
    %c0_0 = arith.constant 0 : index
    %0 = vector.load %arg1[%c0, %c0_0] : memref<8x32xf32, #tpu.memory_space<vmem>>, vector<8x32xf32>
    %c0_1 = arith.constant 0 : index
    %c0_2 = arith.constant 0 : index
    %1 = vector.load %arg6[%c0_1, %c0_2] : memref<3x32xf32, #tpu.memory_space<vmem>>, vector<3x32xf32>
    %c0_3 = arith.constant 0 : index
    %c0_4 = arith.constant 0 : index
    %2 = vector.load %arg3[%c0_3, %c0_4] : memref<8x1xf32, #tpu.memory_space<vmem>>, vector<8x1xf32>
    %c0_5 = arith.constant 0 : index
    %c0_6 = arith.constant 0 : index
    %3 = vector.load %arg4[%c0_5, %c0_6] : memref<8x1xf32, #tpu.memory_space<vmem>>, vector<8x1xf32>
    %c0_7 = arith.constant 0 : index
    %c0_8 = arith.constant 0 : index
    %4 = vector.load %arg5[%c0_7, %c0_8] : memref<8x1xf32, #tpu.memory_space<vmem>>, vector<8x1xf32>
    %c0_9 = arith.constant 0 : index
    %c0_10 = arith.constant 0 : index
    %5 = vector.load %arg7[%c0_9, %c0_10] : memref<8x8xf32, #tpu.memory_space<vmem>>, vector<8x8xf32>
    %c0_11 = arith.constant 0 : index
    %c0_12 = arith.constant 0 : index
    %6 = vector.load %arg8[%c0_11, %c0_12] : memref<8x8xf32, #tpu.memory_space<vmem>>, vector<8x8xf32>
    %c0_13 = arith.constant 0 : index
    %c0_14 = arith.constant 0 : index
    %7 = memref.load %arg9[%c0_13, %c0_14] : memref<1x1xf32, #tpu.memory_space<smem>>
    %cst = arith.constant 0.000000e+00 : f32
    %8 = vector.broadcast %cst : f32 to vector<8x1xf32>
    %9 = vector.extract_strided_slice %0 {offsets = [0, 0], sizes = [8, 31], strides = [1, 1]} : vector<8x32xf32> to vector<8x31xf32>
    %10 = tpu.concatenate %8, %9 in 1 : vector<8x1xf32>, vector<8x31xf32> -> vector<8x32xf32>
    %11 = vector.extract_strided_slice %1 {offsets = [0, 0], sizes = [1, 32], strides = [1, 1]} : vector<3x32xf32> to vector<1x32xf32>
    %12 = vector.broadcast %11 : vector<1x32xf32> to vector<8x32xf32>
    %13 = arith.mulf %10, %12 : vector<8x32xf32>
    %14 = vector.extract_strided_slice %0 {offsets = [0, 1], sizes = [8, 31], strides = [1, 1]} : vector<8x32xf32> to vector<8x31xf32>
    %cst_15 = arith.constant 0.000000e+00 : f32
    %15 = vector.broadcast %cst_15 : f32 to vector<8x1xf32>
    %16 = tpu.concatenate %14, %15 in 1 : vector<8x31xf32>, vector<8x1xf32> -> vector<8x32xf32>
    %17 = vector.extract_strided_slice %1 {offsets = [2, 0], sizes = [1, 32], strides = [1, 1]} : vector<3x32xf32> to vector<1x32xf32>
    %18 = vector.broadcast %17 : vector<1x32xf32> to vector<8x32xf32>
    %19 = arith.mulf %16, %18 : vector<8x32xf32>
    %20 = tpu.concatenate %13, %0, %19 in 0 : vector<8x32xf32>, vector<8x32xf32>, vector<8x32xf32> -> vector<24x32xf32>
    %c0_16 = arith.constant 0 : index
    %c0_17 = arith.constant 0 : index
    %21 = vector.load %arg2[%c0_16, %c0_17] : memref<8x24xf32, #tpu.memory_space<vmem>>, vector<8x24xf32>
    %cst_18 = arith.constant dense<0.000000e+00> : vector<8x32xf32>
    %22 = tpu.matmul %21, %20, %cst_18 {dimension_numbers = #tpu.dot_dimension_numbers<[1], [0], [0], [1], [0, 0, 1, 1], [], []>} : vector<8x24xf32>, vector<24x32xf32>, vector<8x32xf32> -> vector<8x32xf32>
    %23 = vector.broadcast %2 : vector<8x1xf32> to vector<8x32xf32>
    %24 = arith.addf %22, %23 : vector<8x32xf32>
    %25 = vector.extract_strided_slice %24 {offsets = [0, 0], sizes = [8, 16], strides = [1, 1]} : vector<8x32xf32> to vector<8x16xf32>
    %cst_19 = arith.constant dense<0.000000e+00> : vector<8xf32>
    %26 = vector.multi_reduction <add>, %25, %cst_19 [1] : vector<8x16xf32> to vector<8xf32>
    %27 = vector.shape_cast %26 : vector<8xf32> to vector<8x1xf32>
    %cst_20 = arith.constant dense<0.000000e+00> : vector<8x1xf32>
    %28 = tpu.matmul %6, %27, %cst_20 {dimension_numbers = #tpu.dot_dimension_numbers<[1], [0], [0], [1], [0, 0, 1, 1], [], []>} : vector<8x8xf32>, vector<8x1xf32>, vector<8x1xf32> -> vector<8x1xf32>
    %cst_21 = arith.constant dense<0.000000e+00> : vector<8x1xf32>
    %29 = tpu.matmul %5, %28, %cst_21 {dimension_numbers = #tpu.dot_dimension_numbers<[1], [0], [0], [1], [0, 0, 1, 1], [], []>} : vector<8x8xf32>, vector<8x1xf32>, vector<8x1xf32> -> vector<8x1xf32>
    %cst_22 = arith.constant 6.250000e-02 : f32
    %30 = vector.broadcast %cst_22 : f32 to vector<8x1xf32>
    %31 = arith.mulf %29, %30 : vector<8x1xf32>
    %32 = vector.broadcast %31 : vector<8x1xf32> to vector<8x16xf32>
    %33 = arith.subf %25, %32 : vector<8x16xf32>
    %34 = arith.mulf %33, %33 : vector<8x16xf32>
    %cst_23 = arith.constant dense<0.000000e+00> : vector<8xf32>
    %35 = vector.multi_reduction <add>, %34, %cst_23 [1] : vector<8x16xf32> to vector<8xf32>
    %36 = vector.shape_cast %35 : vector<8xf32> to vector<8x1xf32>
    %cst_24 = arith.constant dense<0.000000e+00> : vector<8x1xf32>
    %37 = tpu.matmul %6, %36, %cst_24 {dimension_numbers = #tpu.dot_dimension_numbers<[1], [0], [0], [1], [0, 0, 1, 1], [], []>} : vector<8x8xf32>, vector<8x1xf32>, vector<8x1xf32> -> vector<8x1xf32>
    %cst_25 = arith.constant 6.250000e-02 : f32
    %38 = vector.broadcast %cst_25 : f32 to vector<8x1xf32>
    %39 = arith.mulf %37, %38 : vector<8x1xf32>
    %cst_26 = arith.constant 9.99999974E-6 : f32
    %40 = vector.broadcast %cst_26 : f32 to vector<8x1xf32>
    %41 = arith.addf %39, %40 : vector<8x1xf32>
    %42 = math.rsqrt %41 : vector<8x1xf32>
    %cst_27 = arith.constant dense<0.000000e+00> : vector<8x1xf32>
    %43 = tpu.matmul %5, %42, %cst_27 {dimension_numbers = #tpu.dot_dimension_numbers<[1], [0], [0], [1], [0, 0, 1, 1], [], []>} : vector<8x8xf32>, vector<8x1xf32>, vector<8x1xf32> -> vector<8x1xf32>
    %44 = arith.mulf %3, %43 : vector<8x1xf32>
    %45 = vector.broadcast %44 : vector<8x1xf32> to vector<8x16xf32>
    %46 = arith.mulf %33, %45 : vector<8x16xf32>
    %47 = vector.broadcast %4 : vector<8x1xf32> to vector<8x16xf32>
    %48 = arith.addf %46, %47 : vector<8x16xf32>
    %cst_28 = arith.constant 0.000000e+00 : f32
    %49 = vector.broadcast %cst_28 : f32 to vector<8x16xf32>
    %50 = arith.cmpf oge, %48, %49 : vector<8x16xf32>
    %51 = vector.broadcast %7 : f32 to vector<8x16xf32>
    %52 = arith.mulf %51, %48 : vector<8x16xf32>
    %53 = arith.select %50, %48, %52 : vector<8x16xi1>, vector<8x16xf32>
    %54 = vector.shape_cast %53 : vector<8x16xf32> to vector<8x8x2xf32>
    %cst_29 = arith.constant dense<0xFF800000> : vector<8x8xf32>
    %55 = vector.multi_reduction <maximumf>, %54, %cst_29 [2] : vector<8x8x2xf32> to vector<8x8xf32>
    %c0_30 = arith.constant 0 : index
    %c0_31 = arith.constant 0 : index
    %56 = vector.load %arg10[%c0_30, %c0_31] : memref<8x16xf32, #tpu.memory_space<vmem>>, vector<8x8xf32>
    tpu.vector_store %arg10[%c0_30, %c0_31], %55 {strides = array<i32>} : memref<8x16xf32, #tpu.memory_space<vmem>>, vector<8x8xf32>,
    %57 = vector.extract_strided_slice %24 {offsets = [0, 16], sizes = [8, 16], strides = [1, 1]} : vector<8x32xf32> to vector<8x16xf32>
    %cst_32 = arith.constant dense<0.000000e+00> : vector<8xf32>
    %58 = vector.multi_reduction <add>, %57, %cst_32 [1] : vector<8x16xf32> to vector<8xf32>
    %59 = vector.shape_cast %58 : vector<8xf32> to vector<8x1xf32>
    %cst_33 = arith.constant dense<0.000000e+00> : vector<8x1xf32>
    %60 = tpu.matmul %6, %59, %cst_33 {dimension_numbers = #tpu.dot_dimension_numbers<[1], [0], [0], [1], [0, 0, 1, 1], [], []>} : vector<8x8xf32>, vector<8x1xf32>, vector<8x1xf32> -> vector<8x1xf32>
    %cst_34 = arith.constant dense<0.000000e+00> : vector<8x1xf32>
    %61 = tpu.matmul %5, %60, %cst_34 {dimension_numbers = #tpu.dot_dimension_numbers<[1], [0], [0], [1], [0, 0, 1, 1], [], []>} : vector<8x8xf32>, vector<8x1xf32>, vector<8x1xf32> -> vector<8x1xf32>
    %cst_35 = arith.constant 6.250000e-02 : f32
    %62 = vector.broadcast %cst_35 : f32 to vector<8x1xf32>
    %63 = arith.mulf %61, %62 : vector<8x1xf32>
    %64 = vector.broadcast %63 : vector<8x1xf32> to vector<8x16xf32>
    %65 = arith.subf %57, %64 : vector<8x16xf32>
    %66 = arith.mulf %65, %65 : vector<8x16xf32>
    %cst_36 = arith.constant dense<0.000000e+00> : vector<8xf32>
    %67 = vector.multi_reduction <add>, %66, %cst_36 [1] : vector<8x16xf32> to vector<8xf32>
    %68 = vector.shape_cast %67 : vector<8xf32> to vector<8x1xf32>
    %cst_37 = arith.constant dense<0.000000e+00> : vector<8x1xf32>
    %69 = tpu.matmul %6, %68, %cst_37 {dimension_numbers = #tpu.dot_dimension_numbers<[1], [0], [0], [1], [0, 0, 1, 1], [], []>} : vector<8x8xf32>, vector<8x1xf32>, vector<8x1xf32> -> vector<8x1xf32>
    %cst_38 = arith.constant 6.250000e-02 : f32
    %70 = vector.broadcast %cst_38 : f32 to vector<8x1xf32>
    %71 = arith.mulf %69, %70 : vector<8x1xf32>
    %cst_39 = arith.constant 9.99999974E-6 : f32
    %72 = vector.broadcast %cst_39 : f32 to vector<8x1xf32>
    %73 = arith.addf %71, %72 : vector<8x1xf32>
    %74 = math.rsqrt %73 : vector<8x1xf32>
    %cst_40 = arith.constant dense<0.000000e+00> : vector<8x1xf32>
    %75 = tpu.matmul %5, %74, %cst_40 {dimension_numbers = #tpu.dot_dimension_numbers<[1], [0], [0], [1], [0, 0, 1, 1], [], []>} : vector<8x8xf32>, vector<8x1xf32>, vector<8x1xf32> -> vector<8x1xf32>
    %76 = arith.mulf %3, %75 : vector<8x1xf32>
    %77 = vector.broadcast %76 : vector<8x1xf32> to vector<8x16xf32>
    %78 = arith.mulf %65, %77 : vector<8x16xf32>
    %79 = vector.broadcast %4 : vector<8x1xf32> to vector<8x16xf32>
    %80 = arith.addf %78, %79 : vector<8x16xf32>
    %cst_41 = arith.constant 0.000000e+00 : f32
    %81 = vector.broadcast %cst_41 : f32 to vector<8x16xf32>
    %82 = arith.cmpf oge, %80, %81 : vector<8x16xf32>
    %83 = vector.broadcast %7 : f32 to vector<8x16xf32>
    %84 = arith.mulf %83, %80 : vector<8x16xf32>
    %85 = arith.select %82, %80, %84 : vector<8x16xi1>, vector<8x16xf32>
    %86 = vector.shape_cast %85 : vector<8x16xf32> to vector<8x8x2xf32>
    %cst_42 = arith.constant dense<0xFF800000> : vector<8x8xf32>
    %87 = vector.multi_reduction <maximumf>, %86, %cst_42 [2] : vector<8x8x2xf32> to vector<8x8xf32>
    %c0_43 = arith.constant 0 : index
    %c8 = arith.constant 8 : index
    %88 = vector.load %arg10[%c0_43, %c8] : memref<8x16xf32, #tpu.memory_space<vmem>>, vector<8x8xf32>
    tpu.vector_store %arg10[%c0_43, %c8], %87 {strides = array<i32>} : memref<8x16xf32, #tpu.memory_space<vmem>>, vector<8x8xf32>,
    return
  }
  func.func @transform_0(%arg0: i32) -> (i32, i32) {
    %c0_i32 = arith.constant 0 : i32
    %c0_i32_0 = arith.constant 0 : i32
    return %c0_i32, %arg0 : i32, i32
  }
  func.func @transform_1(%arg0: i32) -> (i32, i32) {
    %c0_i32 = arith.constant 0 : i32
    %c0_i32_0 = arith.constant 0 : i32
    %c0_i32_1 = arith.constant 0 : i32
    return %c0_i32, %c0_i32_0 : i32, i32
  }
  func.func @transform_2(%arg0: i32) -> (i32, i32) {
    %c0_i32 = arith.constant 0 : i32
    %c0_i32_0 = arith.constant 0 : i32
    %c0_i32_1 = arith.constant 0 : i32
    return %c0_i32, %c0_i32_0 : i32, i32
  }
  func.func @transform_3(%arg0: i32) -> (i32, i32) {
    %c0_i32 = arith.constant 0 : i32
    %c0_i32_0 = arith.constant 0 : i32
    %c0_i32_1 = arith.constant 0 : i32
    return %c0_i32, %c0_i32_0 : i32, i32
  }
  func.func @transform_4(%arg0: i32) -> (i32, i32) {
    %c0_i32 = arith.constant 0 : i32
    %c0_i32_0 = arith.constant 0 : i32
    %c0_i32_1 = arith.constant 0 : i32
    return %c0_i32, %c0_i32_0 : i32, i32
  }
  func.func @transform_5(%arg0: i32) -> (i32, i32) {
    %c0_i32 = arith.constant 0 : i32
    %c0_i32_0 = arith.constant 0 : i32
    %c0_i32_1 = arith.constant 0 : i32
    return %c0_i32, %c0_i32_0 : i32, i32
  }
  func.func @transform_6(%arg0: i32) -> (i32, i32) {
    %c0_i32 = arith.constant 0 : i32
    %c0_i32_0 = arith.constant 0 : i32
    %c0_i32_1 = arith.constant 0 : i32
    return %c0_i32, %c0_i32_0 : i32, i32
  }
  func.func @transform_7(%arg0: i32) -> (i32, i32) {
    %c0_i32 = arith.constant 0 : i32
    %c0_i32_0 = arith.constant 0 : i32
    %c0_i32_1 = arith.constant 0 : i32
    return %c0_i32, %c0_i32_0 : i32, i32
  }
  func.func @transform_8(%arg0: i32) -> (i32, i32) {
    %c0_i32 = arith.constant 0 : i32
    %c0_i32_0 = arith.constant 0 : i32
    %c0_i32_1 = arith.constant 0 : i32
    return %c0_i32, %c0_i32_0 : i32, i32
  }
  func.func @transform_9(%arg0: i32) -> (i32, i32) {
    %c0_i32 = arith.constant 0 : i32
    %c0_i32_0 = arith.constant 0 : i32
    return %c0_i32, %arg0 : i32, i32
  }
}

</mosaic_0001>

<llo_original>
// kernel: tpu_custom_call.1
$region0: #{tpu_custom_call.1}
  #allocation0 [shape = 'u32[]', space=smem, size = 0x4, offset = 0x4, fixed_abs, tag = 'smem constant byte address 0x4 - core index']
  #allocation1 [shape = 'u32[144,128]{1,0:T(1,128)}', space=vmem, size = 0x12000, scoped, tag = 'internal scratch']
  #allocation2 [shape = 'f32[1,1]{1,0:T(1,128)S(6)}', space=smem, size = 0x200, scoped, tag = 'scoped memory for tpu_custom_call.1']
  %s0 = inlined_call_operand.vmem [shape: f32[8,32], index: 0, kind: input, shape index: {}]
  %s1 = inlined_call_operand.vmem [shape: f32[8,24], index: 1, kind: input, shape index: {}]
  %s2 = inlined_call_operand.vmem [shape: f32[8,1], index: 2, kind: input, shape index: {}]
  %s3 = inlined_call_operand.vmem [shape: f32[8,1], index: 3, kind: input, shape index: {}]
  %s4 = inlined_call_operand.vmem [shape: f32[8,1], index: 4, kind: input, shape index: {}]
  %s5 = inlined_call_operand.vmem [shape: f32[3,32], index: 5, kind: input, shape index: {}]
  %s6 = inlined_call_operand.vmem [shape: f32[8,8], index: 6, kind: input, shape index: {}]
  %s7 = inlined_call_operand.vmem [shape: f32[8,8], index: 7, kind: input, shape index: {}]
  %s8 = inlined_call_operand.<no memory space> [shape: f32[1,1], index: 8, kind: input, shape index: {}]
  %s9 = inlined_call_operand.hbm [shape: f32[8,16], index: 9, kind: output, shape index: {}]
  %s10 = sld [smem:[#allocation0]]
  $region46: #{tpu_custom_call.1} parent=0
    _
  %s12 = ssub.s32 1, %s10
  %s13 = scalar_select 0, %s12, %s10
  %14 = sst [smem:[#allocation2]] %s8
  $region1: #{tpu_custom_call.1} parent=0
    #allocation3 [shape = 'u8[4096]{0}', space=vmem, size = 0x1000, scoped, tag = 'output window, operand 0, single buffered']
    #allocation4 [shape = 's32[1]{0}', space=sflag, size = 0x4, scoped, tag = 'scoped memory for tpu_custom_call.1']
    %15 = vsyncpa [#allocation4], 0
    // Predicated region
    $region2: #{tpu_custom_call.1} parent=1 // pred_check
      _
    $region3: #{tpu_custom_call.1} parent=1 // pred_check_branch
      %17 = sbr.rel (0) target = $region5
    $region4: #{tpu_custom_call.1} parent=1 // pred_region
      _
    $region5: #{tpu_custom_call.1} parent=1 // pred_fallthru
      _
    // Predicated region
    $region6: #{tpu_custom_call.1} parent=1 // pred_check
      _
    $region7: #{tpu_custom_call.1} parent=1 // pred_check_branch
      %19 = sbr.rel (0) target = $region9
    $region8: #{tpu_custom_call.1} parent=1 // pred_region
      _
    $region9: #{tpu_custom_call.1} parent=1 // pred_fallthru
      _
    // Predicated region
    $region10: #{tpu_custom_call.1} parent=1 // pred_check
      _
    $region11: #{tpu_custom_call.1} parent=1 // pred_check_branch
      %21 = sbr.rel (0) target = $region13
    $region12: #{tpu_custom_call.1} parent=1 // pred_region
      _
    $region13: #{tpu_custom_call.1} parent=1 // pred_fallthru
      _
    // Predicated region
    $region14: #{tpu_custom_call.1} parent=1 // pred_check
      _
    $region15: #{tpu_custom_call.1} parent=1 // pred_check_branch
      %23 = sbr.rel (0) target = $region17
    $region16: #{tpu_custom_call.1} parent=1 // pred_region
      _
    $region17: #{tpu_custom_call.1} parent=1 // pred_fallthru
      _
    // Predicated region
    $region18: #{tpu_custom_call.1} parent=1 // pred_check
      _
    $region19: #{tpu_custom_call.1} parent=1 // pred_check_branch
      %25 = sbr.rel (0) target = $region21
    $region20: #{tpu_custom_call.1} parent=1 // pred_region
      _
    $region21: #{tpu_custom_call.1} parent=1 // pred_fallthru
      _
    // Predicated region
    $region22: #{tpu_custom_call.1} parent=1 // pred_check
      _
    $region23: #{tpu_custom_call.1} parent=1 // pred_check_branch
      %27 = sbr.rel (0) target = $region25
    $region24: #{tpu_custom_call.1} parent=1 // pred_region
      _
    $region25: #{tpu_custom_call.1} parent=1 // pred_fallthru
      _
    // Predicated region
    $region26: #{tpu_custom_call.1} parent=1 // pred_check
      _
    $region27: #{tpu_custom_call.1} parent=1 // pred_check_branch
      %29 = sbr.rel (0) target = $region29
    $region28: #{tpu_custom_call.1} parent=1 // pred_region
      _
    $region29: #{tpu_custom_call.1} parent=1 // pred_fallthru
      _
    // Predicated region
    $region30: #{tpu_custom_call.1} parent=1 // pred_check
      _
    $region31: #{tpu_custom_call.1} parent=1 // pred_check_branch
      %31 = sbr.rel (0) target = $region33
    $region32: #{tpu_custom_call.1} parent=1 // pred_region
      _
    $region33: #{tpu_custom_call.1} parent=1 // pred_fallthru
      _
    // Predicated region
    $region34: #{tpu_custom_call.1} parent=1 // pred_check
      _
    $region35: #{tpu_custom_call.1} parent=1 // pred_check_branch
      %33 = sbr.rel (0) target = $region37
    $region36: #{tpu_custom_call.1} parent=1 // pred_region
      _
    $region37: #{tpu_custom_call.1} parent=1 // pred_fallthru
      _
    %v34 = vld [vmem:[%s0] sm:$0xff]
    %v35 = vld [vmem:[%s5] sm:$0x7]
    %v36 = vld [vmem:[%s2] sm:$0xff]
    %v37 = vld [vmem:[%s3] sm:$0xff]
    %v38 = vld [vmem:[%s4] sm:$0xff]
    %v39 = vld [vmem:[%s6] sm:$0xff]
    %v40 = vld [vmem:[%s7] sm:$0xff]
    %s41 = sld [smem:[#allocation2]]
    %43 = vrot.lane.b32.xlu0 %v34, 1
    %v44 = vpop.permute.xlu0 %43
    %vm46 = vcmask 7168
    %v47 = vsel %vm46, 0.0, %v44
    %v48 = vlaneseq
    %v49 = vshrl.u32 %v48, 7
    %v50 = vsub.s32 0, %v49
    %v51 = vrot.slane %v35, %v50
    %v52 = vmul.f32 %v47, %v51
    %53 = vrot.lane.b32.xlu0 %v34, 127
    %v54 = vpop.permute.xlu0 %53
    %vm56 = vcmask 252928
    %v57 = vsel %vm56, %v54, 0.0
    %v58 = vlaneseq
    %v59 = vshrl.u32 %v58, 7
    %v60 = vsub.s32 2, %v59
    %v61 = vrot.slane %v35, %v60
    %v62 = vmul.f32 %v57, %v61
    %v63 = vld [vmem:[%s1] sm:$0xff]
    %65 = vset.pattern.permute.xlu0 0
    %66 = vperm.xlu0 %65, %v36
    %v67 = vpop.permute.xlu0 %66
    %vm69 = vcmask 195584
    %v71 = vsel %vm69, %v63, 0
    %73 = vmatprep.subr.mxu0 0.0
    %74 = vmatpush1.msra.mxu0 0.0
    %75 = vmatprep.subr.mxu0 0.0
    %76 = vmatpush1.msra.mxu0 0.0
    %77 = vmatprep.subr.mxu0 0.0
    %78 = vmatpush1.msra.mxu0 0.0
    %79 = vmatprep.subr.mxu0 0.0
    %80 = vmatpush1.msra.mxu0 0.0
    %81 = vmatprep.subr.mxu0 0.0
    %82 = vmatpush1.msra.mxu0 0.0
    %83 = vmatprep.subr.mxu0 0.0
    %84 = vmatpush1.msra.mxu0 0.0
    %85 = vmatprep.subr.mxu0 0.0
    %86 = vmatpush1.msra.mxu0 0.0
    %87 = vmatprep.subr.mxu0 0.0
    %88 = vmatpush1.msra.mxu0 0.0
    %89 = vmatprep.subr.mxu0 0.0
    %90 = vmatpush1.msra.mxu0 0.0
    %91 = vmatprep.subr.mxu0 0.0
    %92 = vmatpush1.msra.mxu0 0.0
    %93 = vmatprep.subr.mxu0 0.0
    %94 = vmatpush1.msra.mxu0 0.0
    %95 = vmatprep.subr.mxu0 0.0
    %96 = vmatpush1.msra.mxu0 0.0
    %97 = vmatprep.subr.mxu0 0.0
    %98 = vmatpush1.msra.mxu0 0.0
    %99 = vmatprep.subr.mxu0 0.0
    %100 = vmatpush1.msra.mxu0 %v62
    %101 = vmatprep.subr.mxu0 0.0
    %102 = vmatpush1.msra.mxu0 %v34
    %103 = vmatprep.subr.mxu0 0.0
    %104 = vmatpush1.msra.mxu0 %v52
    %105 = vmatprep.subr.mxu0 0.0
    %106 = vmatpush2.msra.mxu0 0.0
    %107 = vmatprep.subr.mxu0 0.0
    %108 = vmatpush2.msra.mxu0 0.0
    %109 = vmatprep.subr.mxu0 0.0
    %110 = vmatpush2.msra.mxu0 0.0
    %111 = vmatprep.subr.mxu0 0.0
    %112 = vmatpush2.msra.mxu0 0.0
    %113 = vmatprep.subr.mxu0 0.0
    %114 = vmatpush2.msra.mxu0 0.0
    %115 = vmatprep.subr.mxu0 0.0
    %116 = vmatpush2.msra.mxu0 0.0
    %117 = vmatprep.subr.mxu0 0.0
    %118 = vmatpush2.msra.mxu0 0.0
    %119 = vmatprep.subr.mxu0 0.0
    %120 = vmatpush2.msra.mxu0 0.0
    %121 = vmatprep.subr.mxu0 0.0
    %122 = vmatpush2.msra.mxu0 0.0
    %123 = vmatprep.subr.mxu0 0.0
    %124 = vmatpush2.msra.mxu0 0.0
    %125 = vmatprep.subr.mxu0 0.0
    %126 = vmatpush2.msra.mxu0 0.0
    %127 = vmatprep.subr.mxu0 0.0
    %128 = vmatpush2.msra.mxu0 0.0
    %129 = vmatprep.subr.mxu0 0.0
    %130 = vmatpush2.msra.mxu0 0.0
    %131 = vmatprep.subr.mxu0 0.0
    %132 = vmatpush2.msra.mxu0 0.0
    %133 = vmatprep.subr.mxu0 0.0
    %134 = vmatpush2.msra.mxu0 0.0
    %135 = vmatprep.subr.mxu0 0.0
    %136 = vmatpush2.msra.mxu0 0.0
    %137 = vmatprep.mubr.f32.mxu0 0.0
    %138 = vmatmul.mubr.f32.gmra.mxu0 %v71
    %v139 = vpop.f32.mrf.mxu0
    %v140 = vadd.f32 %v67, %v139
    %v141 = vpop.f32.mrf.mxu0
    %142 = vdwg.mxu0
    %vm143 = vcmask 130048
    %v144 = vsel %vm143, %v140, 0.0
    %145 = vadd.xlane.f32.xlu0 %v144
    %v146 = vpop.xlane.xlu0 %145
    %vm147 = vcmask 64512
    %v149 = vsel %vm147, %v40, 0
    %151 = vmatprep.subr.mxu0 0.0
    %152 = vmatpush1.msra.mxu0 0.0
    %153 = vmatprep.subr.mxu0 0.0
    %154 = vmatpush1.msra.mxu0 0.0
    %155 = vmatprep.subr.mxu0 0.0
    %156 = vmatpush1.msra.mxu0 0.0
    %157 = vmatprep.subr.mxu0 0.0
    %158 = vmatpush1.msra.mxu0 0.0
    %159 = vmatprep.subr.mxu0 0.0
    %160 = vmatpush1.msra.mxu0 0.0
    %161 = vmatprep.subr.mxu0 0.0
    %162 = vmatpush1.msra.mxu0 0.0
    %163 = vmatprep.subr.mxu0 0.0
    %164 = vmatpush1.msra.mxu0 0.0
    %165 = vmatprep.subr.mxu0 0.0
    %166 = vmatpush1.msra.mxu0 0.0
    %167 = vmatprep.subr.mxu0 0.0
    %168 = vmatpush1.msra.mxu0 0.0
    %169 = vmatprep.subr.mxu0 0.0
    %170 = vmatpush1.msra.mxu0 0.0
    %171 = vmatprep.subr.mxu0 0.0
    %172 = vmatpush1.msra.mxu0 0.0
    %173 = vmatprep.subr.mxu0 0.0
    %174 = vmatpush1.msra.mxu0 0.0
    %175 = vmatprep.subr.mxu0 0.0
    %176 = vmatpush1.msra.mxu0 0.0
    %177 = vmatprep.subr.mxu0 0.0
    %178 = vmatpush1.msra.mxu0 0.0
    %179 = vmatprep.subr.mxu0 0.0
    %180 = vmatpush1.msra.mxu0 0.0
    %181 = vmatprep.subr.mxu0 0.0
    %182 = vmatpush1.msra.mxu0 %v146
    %183 = vmatprep.subr.mxu0 0.0
    %184 = vmatpush2.msra.mxu0 0.0
    %185 = vmatprep.subr.mxu0 0.0
    %186 = vmatpush2.msra.mxu0 0.0
    %187 = vmatprep.subr.mxu0 0.0
    %188 = vmatpush2.msra.mxu0 0.0
    %189 = vmatprep.subr.mxu0 0.0
    %190 = vmatpush2.msra.mxu0 0.0
    %191 = vmatprep.subr.mxu0 0.0
    %192 = vmatpush2.msra.mxu0 0.0
    %193 = vmatprep.subr.mxu0 0.0
    %194 = vmatpush2.msra.mxu0 0.0
    %195 = vmatprep.subr.mxu0 0.0
    %196 = vmatpush2.msra.mxu0 0.0
    %197 = vmatprep.subr.mxu0 0.0
    %198 = vmatpush2.msra.mxu0 0.0
    %199 = vmatprep.subr.mxu0 0.0
    %200 = vmatpush2.msra.mxu0 0.0
    %201 = vmatprep.subr.mxu0 0.0
    %202 = vmatpush2.msra.mxu0 0.0
    %203 = vmatprep.subr.mxu0 0.0
    %204 = vmatpush2.msra.mxu0 0.0
    %205 = vmatprep.subr.mxu0 0.0
    %206 = vmatpush2.msra.mxu0 0.0
    %207 = vmatprep.subr.mxu0 0.0
    %208 = vmatpush2.msra.mxu0 0.0
    %209 = vmatprep.subr.mxu0 0.0
    %210 = vmatpush2.msra.mxu0 0.0
    %211 = vmatprep.subr.mxu0 0.0
    %212 = vmatpush2.msra.mxu0 0.0
    %213 = vmatprep.subr.mxu0 0.0
    %214 = vmatpush2.msra.mxu0 0.0
    %215 = vmatprep.mubr.f32.mxu0 0.0
    %216 = vmatmul.mubr.f32.gmra.mxu0 %v149
    %v217 = vpop.f32.mrf.mxu0
    %v218 = vadd.f32 0.0, %v217
    %v219 = vpop.f32.mrf.mxu0
    %220 = vdwg.mxu0
    %v222 = vsel %vm147, %v39, 0
    %224 = vmatprep.subr.mxu0 0.0
    %225 = vmatpush1.msra.mxu0 0.0
    %226 = vmatprep.subr.mxu0 0.0
    %227 = vmatpush1.msra.mxu0 0.0
    %228 = vmatprep.subr.mxu0 0.0
    %229 = vmatpush1.msra.mxu0 0.0
    %230 = vmatprep.subr.mxu0 0.0
    %231 = vmatpush1.msra.mxu0 0.0
    %232 = vmatprep.subr.mxu0 0.0
    %233 = vmatpush1.msra.mxu0 0.0
    %234 = vmatprep.subr.mxu0 0.0
    %235 = vmatpush1.msra.mxu0 0.0
    %236 = vmatprep.subr.mxu0 0.0
    %237 = vmatpush1.msra.mxu0 0.0
    %238 = vmatprep.subr.mxu0 0.0
    %239 = vmatpush1.msra.mxu0 0.0
    %240 = vmatprep.subr.mxu0 0.0
    %241 = vmatpush1.msra.mxu0 0.0
    %242 = vmatprep.subr.mxu0 0.0
    %243 = vmatpush1.msra.mxu0 0.0
    %244 = vmatprep.subr.mxu0 0.0
    %245 = vmatpush1.msra.mxu0 0.0
    %246 = vmatprep.subr.mxu0 0.0
    %247 = vmatpush1.msra.mxu0 0.0
    %248 = vmatprep.subr.mxu0 0.0
    %249 = vmatpush1.msra.mxu0 0.0
    %250 = vmatprep.subr.mxu0 0.0
    %251 = vmatpush1.msra.mxu0 0.0
    %252 = vmatprep.subr.mxu0 0.0
    %253 = vmatpush1.msra.mxu0 0.0
    %254 = vmatprep.subr.mxu0 0.0
    %255 = vmatpush1.msra.mxu0 %v218
    %256 = vmatprep.subr.mxu0 0.0
    %257 = vmatpush2.msra.mxu0 0.0
    %258 = vmatprep.subr.mxu0 0.0
    %259 = vmatpush2.msra.mxu0 0.0
    %260 = vmatprep.subr.mxu0 0.0
    %261 = vmatpush2.msra.mxu0 0.0
    %262 = vmatprep.subr.mxu0 0.0
    %263 = vmatpush2.msra.mxu0 0.0
    %264 = vmatprep.subr.mxu0 0.0
    %265 = vmatpush2.msra.mxu0 0.0
    %266 = vmatprep.subr.mxu0 0.0
    %267 = vmatpush2.msra.mxu0 0.0
    %268 = vmatprep.subr.mxu0 0.0
    %269 = vmatpush2.msra.mxu0 0.0
    %270 = vmatprep.subr.mxu0 0.0
    %271 = vmatpush2.msra.mxu0 0.0
    %272 = vmatprep.subr.mxu0 0.0
    %273 = vmatpush2.msra.mxu0 0.0
    %274 = vmatprep.subr.mxu0 0.0
    %275 = vmatpush2.msra.mxu0 0.0
    %276 = vmatprep.subr.mxu0 0.0
    %277 = vmatpush2.msra.mxu0 0.0
    %278 = vmatprep.subr.mxu0 0.0
    %279 = vmatpush2.msra.mxu0 0.0
    %280 = vmatprep.subr.mxu0 0.0
    %281 = vmatpush2.msra.mxu0 0.0
    %282 = vmatprep.subr.mxu0 0.0
    %283 = vmatpush2.msra.mxu0 0.0
    %284 = vmatprep.subr.mxu0 0.0
    %285 = vmatpush2.msra.mxu0 0.0
    %286 = vmatprep.subr.mxu0 0.0
    %287 = vmatpush2.msra.mxu0 0.0
    %288 = vmatprep.mubr.f32.mxu0 0.0
    %289 = vmatmul.mubr.f32.gmra.mxu0 %v222
    %v290 = vpop.f32.mrf.mxu0
    %v291 = vadd.f32 0.0, %v290
    %v292 = vpop.f32.mrf.mxu0
    %293 = vdwg.mxu0
    %v294 = vmul.f32 %v291, 0.0625
    %296 = vset.pattern.permute.xlu0 0
    %297 = vperm.xlu0 %296, %v294
    %v298 = vpop.permute.xlu0 %297
    %v300 = vsub.f32 %v140, %v298
    %v301 = vmul.f32 %v300, %v300
    %v302 = vsel %vm143, %v301, 0.0
    %303 = vadd.xlane.f32.xlu0 %v302
    %v304 = vpop.xlane.xlu0 %303
    %305 = vmatprep.subr.mxu0 0.0
    %306 = vmatpush1.msra.mxu0 0.0
    %307 = vmatprep.subr.mxu0 0.0
    %308 = vmatpush1.msra.mxu0 0.0
    %309 = vmatprep.subr.mxu0 0.0
    %310 = vmatpush1.msra.mxu0 0.0
    %311 = vmatprep.subr.mxu0 0.0
    %312 = vmatpush1.msra.mxu0 0.0
    %313 = vmatprep.subr.mxu0 0.0
    %314 = vmatpush1.msra.mxu0 0.0
    %315 = vmatprep.subr.mxu0 0.0
    %316 = vmatpush1.msra.mxu0 0.0
    %317 = vmatprep.subr.mxu0 0.0
    %318 = vmatpush1.msra.mxu0 0.0
    %319 = vmatprep.subr.mxu0 0.0
    %320 = vmatpush1.msra.mxu0 0.0
    %321 = vmatprep.subr.mxu0 0.0
    %322 = vmatpush1.msra.mxu0 0.0
    %323 = vmatprep.subr.mxu0 0.0
    %324 = vmatpush1.msra.mxu0 0.0
    %325 = vmatprep.subr.mxu0 0.0
    %326 = vmatpush1.msra.mxu0 0.0
    %327 = vmatprep.subr.mxu0 0.0
    %328 = vmatpush1.msra.mxu0 0.0
    %329 = vmatprep.subr.mxu0 0.0
    %330 = vmatpush1.msra.mxu0 0.0
    %331 = vmatprep.subr.mxu0 0.0
    %332 = vmatpush1.msra.mxu0 0.0
    %333 = vmatprep.subr.mxu0 0.0
    %334 = vmatpush1.msra.mxu0 0.0
    %335 = vmatprep.subr.mxu0 0.0
    %336 = vmatpush1.msra.mxu0 %v304
    %337 = vmatprep.subr.mxu0 0.0
    %338 = vmatpush2.msra.mxu0 0.0
    %339 = vmatprep.subr.mxu0 0.0
    %340 = vmatpush2.msra.mxu0 0.0
    %341 = vmatprep.subr.mxu0 0.0
    %342 = vmatpush2.msra.mxu0 0.0
    %343 = vmatprep.subr.mxu0 0.0
    %344 = vmatpush2.msra.mxu0 0.0
    %345 = vmatprep.subr.mxu0 0.0
    %346 = vmatpush2.msra.mxu0 0.0
    %347 = vmatprep.subr.mxu0 0.0
    %348 = vmatpush2.msra.mxu0 0.0
    %349 = vmatprep.subr.mxu0 0.0
    %350 = vmatpush2.msra.mxu0 0.0
    %351 = vmatprep.subr.mxu0 0.0
    %352 = vmatpush2.msra.mxu0 0.0
    %353 = vmatprep.subr.mxu0 0.0
    %354 = vmatpush2.msra.mxu0 0.0
    %355 = vmatprep.subr.mxu0 0.0
    %356 = vmatpush2.msra.mxu0 0.0
    %357 = vmatprep.subr.mxu0 0.0
    %358 = vmatpush2.msra.mxu0 0.0
    %359 = vmatprep.subr.mxu0 0.0
    %360 = vmatpush2.msra.mxu0 0.0
    %361 = vmatprep.subr.mxu0 0.0
    %362 = vmatpush2.msra.mxu0 0.0
    %363 = vmatprep.subr.mxu0 0.0
    %364 = vmatpush2.msra.mxu0 0.0
    %365 = vmatprep.subr.mxu0 0.0
    %366 = vmatpush2.msra.mxu0 0.0
    %367 = vmatprep.subr.mxu0 0.0
    %368 = vmatpush2.msra.mxu0 0.0
    %369 = vmatprep.mubr.f32.mxu0 0.0
    %370 = vmatmul.mubr.f32.gmra.mxu0 %v149
    %v371 = vpop.f32.mrf.mxu0
    %v372 = vadd.f32 0.0, %v371
    %v373 = vpop.f32.mrf.mxu0
    %374 = vdwg.mxu0
    %v375 = vmul.f32 %v372, 0.0625
    %v376 = vadd.f32 %v375, 1e-05
    %v377 = vrsqrt.pop %v376
    %378 = vmatprep.subr.mxu0 0.0
    %379 = vmatpush1.msra.mxu0 0.0
    %380 = vmatprep.subr.mxu0 0.0
    %381 = vmatpush1.msra.mxu0 0.0
    %382 = vmatprep.subr.mxu0 0.0
    %383 = vmatpush1.msra.mxu0 0.0
    %384 = vmatprep.subr.mxu0 0.0
    %385 = vmatpush1.msra.mxu0 0.0
    %386 = vmatprep.subr.mxu0 0.0
    %387 = vmatpush1.msra.mxu0 0.0
    %388 = vmatprep.subr.mxu0 0.0
    %389 = vmatpush1.msra.mxu0 0.0
    %390 = vmatprep.subr.mxu0 0.0
    %391 = vmatpush1.msra.mxu0 0.0
    %392 = vmatprep.subr.mxu0 0.0
    %393 = vmatpush1.msra.mxu0 0.0
    %394 = vmatprep.subr.mxu0 0.0
    %395 = vmatpush1.msra.mxu0 0.0
    %396 = vmatprep.subr.mxu0 0.0
    %397 = vmatpush1.msra.mxu0 0.0
    %398 = vmatprep.subr.mxu0 0.0
    %399 = vmatpush1.msra.mxu0 0.0
    %400 = vmatprep.subr.mxu0 0.0
    %401 = vmatpush1.msra.mxu0 0.0
    %402 = vmatprep.subr.mxu0 0.0
    %403 = vmatpush1.msra.mxu0 0.0
    %404 = vmatprep.subr.mxu0 0.0
    %405 = vmatpush1.msra.mxu0 0.0
    %406 = vmatprep.subr.mxu0 0.0
    %407 = vmatpush1.msra.mxu0 0.0
    %408 = vmatprep.subr.mxu0 0.0
    %409 = vmatpush1.msra.mxu0 %v377
    %410 = vmatprep.subr.mxu0 0.0
    %411 = vmatpush2.msra.mxu0 0.0
    %412 = vmatprep.subr.mxu0 0.0
    %413 = vmatpush2.msra.mxu0 0.0
    %414 = vmatprep.subr.mxu0 0.0
    %415 = vmatpush2.msra.mxu0 0.0
    %416 = vmatprep.subr.mxu0 0.0
    %417 = vmatpush2.msra.mxu0 0.0
    %418 = vmatprep.subr.mxu0 0.0
    %419 = vmatpush2.msra.mxu0 0.0
    %420 = vmatprep.subr.mxu0 0.0
    %421 = vmatpush2.msra.mxu0 0.0
    %422 = vmatprep.subr.mxu0 0.0
    %423 = vmatpush2.msra.mxu0 0.0
    %424 = vmatprep.subr.mxu0 0.0
    %425 = vmatpush2.msra.mxu0 0.0
    %426 = vmatprep.subr.mxu0 0.0
    %427 = vmatpush2.msra.mxu0 0.0
    %428 = vmatprep.subr.mxu0 0.0
    %429 = vmatpush2.msra.mxu0 0.0
    %430 = vmatprep.subr.mxu0 0.0
    %431 = vmatpush2.msra.mxu0 0.0
    %432 = vmatprep.subr.mxu0 0.0
    %433 = vmatpush2.msra.mxu0 0.0
    %434 = vmatprep.subr.mxu0 0.0
    %435 = vmatpush2.msra.mxu0 0.0
    %436 = vmatprep.subr.mxu0 0.0
    %437 = vmatpush2.msra.mxu0 0.0
    %438 = vmatprep.subr.mxu0 0.0
    %439 = vmatpush2.msra.mxu0 0.0
    %440 = vmatprep.subr.mxu0 0.0
    %441 = vmatpush2.msra.mxu0 0.0
    %442 = vmatprep.mubr.f32.mxu0 0.0
    %443 = vmatmul.mubr.f32.gmra.mxu0 %v222
    %v444 = vpop.f32.mrf.mxu0
    %v445 = vadd.f32 0.0, %v444
    %v446 = vpop.f32.mrf.mxu0
    %447 = vdwg.mxu0
    %v448 = vmul.f32 %v37, %v445
    %450 = vset.pattern.permute.xlu0 0
    %451 = vperm.xlu0 %450, %v448
    %v452 = vpop.permute.xlu0 %451
    %v454 = vmul.f32 %v300, %v452
    %456 = vset.pattern.permute.xlu0 0
    %457 = vperm.xlu0 %456, %v38
    %v458 = vpop.permute.xlu0 %457
    %v460 = vadd.f32 %v454, %v458
    %vm461 = vcmp.ge.f32.partialorder %v460, 0.0
    %v462 = vstv %s41
    %v463 = vmul.f32 %v462, %v460
    %v464 = vsel %vm461, %v460, %v463
    %466 = vrot.lane.b32.xlu0 %v464, 126
    %v467 = vpop.permute.xlu0 %466
    %469 = vrot.lane.b32.xlu0 %v464, 124
    %v470 = vpop.permute.xlu0 %469
    %472 = vrot.lane.b32.xlu0 %v464, 122
    %v473 = vpop.permute.xlu0 %472
    %475 = vrot.lane.b32.xlu0 %v464, 120
    %v476 = vpop.permute.xlu0 %475
    %478 = vrot.lane.b32.xlu0 %v464, 118
    %v479 = vpop.permute.xlu0 %478
    %481 = vrot.lane.b32.xlu0 %v464, 116
    %v482 = vpop.permute.xlu0 %481
    %484 = vrot.lane.b32.xlu0 %v464, 114
    %v485 = vpop.permute.xlu0 %484
    %v487 = vcombine.low %v464, %v470
    %v488 = vcombine.high %v464, %v470
    %v490 = vunpack.c.l.s4 1983009808
    %v491 = vunpack.c.0.s8 %v490
    %v492 = vlaneseq
    %v493 = vshrl.u32 %v492, 7
    %v494 = vsub.s32 %v491, %v493
    %v495 = vrot.slane %v487, %v494
    %v497 = vunpack.c.l.s4 1983009808
    %v498 = vunpack.c.0.s8 %v497
    %v499 = vlaneseq
    %v500 = vshrl.u32 %v499, 7
    %v501 = vsub.s32 %v498, %v500
    %v502 = vrot.slane %v488, %v501
    %v503 = vcombine.low %v467, %v473
    %v504 = vcombine.high %v467, %v473
    %v506 = vunpack.c.l.s4 1983009808
    %v507 = vunpack.c.0.s8 %v506
    %v508 = vlaneseq
    %v509 = vshrl.u32 %v508, 7
    %v510 = vsub.s32 %v507, %v509
    %v511 = vrot.slane %v503, %v510
    %v513 = vunpack.c.l.s4 1983009808
    %v514 = vunpack.c.0.s8 %v513
    %v515 = vlaneseq
    %v516 = vshrl.u32 %v515, 7
    %v517 = vsub.s32 %v514, %v516
    %v518 = vrot.slane %v504, %v517
    %v519 = vcombine.low %v476, %v482
    %v520 = vcombine.high %v476, %v482
    %v522 = vunpack.c.l.s4 1983009808
    %v523 = vunpack.c.0.s8 %v522
    %v524 = vlaneseq
    %v525 = vshrl.u32 %v524, 7
    %v526 = vsub.s32 %v523, %v525
    %v527 = vrot.slane %v519, %v526
    %v529 = vunpack.c.l.s4 1983009808
    %v530 = vunpack.c.0.s8 %v529
    %v531 = vlaneseq
    %v532 = vshrl.u32 %v531, 7
    %v533 = vsub.s32 %v530, %v532
    %v534 = vrot.slane %v520, %v533
    %v535 = vcombine.low %v479, %v485
    %v536 = vcombine.high %v479, %v485
    %v538 = vunpack.c.l.s4 1983009808
    %v539 = vunpack.c.0.s8 %v538
    %v540 = vlaneseq
    %v541 = vshrl.u32 %v540, 7
    %v542 = vsub.s32 %v539, %v541
    %v543 = vrot.slane %v535, %v542
    %v545 = vunpack.c.l.s4 1983009808
    %v546 = vunpack.c.0.s8 %v545
    %v547 = vlaneseq
    %v548 = vshrl.u32 %v547, 7
    %v549 = vsub.s32 %v546, %v548
    %v550 = vrot.slane %v536, %v549
    %v551 = vcombine.low %v495, %v511
    %v552 = vcombine.high %v495, %v511
    %v554 = vunpack.c.l.s4 1934713408
    %v555 = vunpack.c.0.s8 %v554
    %v556 = vlaneseq
    %v557 = vshrl.u32 %v556, 7
    %v558 = vsub.s32 %v555, %v557
    %v559 = vrot.slane %v551, %v558
    %v561 = vunpack.c.l.s4 1934713408
    %v562 = vunpack.c.0.s8 %v561
    %v563 = vlaneseq
    %v564 = vshrl.u32 %v563, 7
    %v565 = vsub.s32 %v562, %v564
    %v566 = vrot.slane %v552, %v565
    %v567 = vcombine.low %v502, %v518
    %v568 = vcombine.high %v502, %v518
    %v570 = vunpack.c.l.s4 1934713408
    %v571 = vunpack.c.0.s8 %v570
    %v572 = vlaneseq
    %v573 = vshrl.u32 %v572, 7
    %v574 = vsub.s32 %v571, %v573
    %v575 = vrot.slane %v567, %v574
    %v577 = vunpack.c.l.s4 1934713408
    %v578 = vunpack.c.0.s8 %v577
    %v579 = vlaneseq
    %v580 = vshrl.u32 %v579, 7
    %v581 = vsub.s32 %v578, %v580
    %v582 = vrot.slane %v568, %v581
    %v583 = vcombine.low %v527, %v543
    %v584 = vcombine.high %v527, %v543
    %v586 = vunpack.c.l.s4 1934713408
    %v587 = vunpack.c.0.s8 %v586
    %v588 = vlaneseq
    %v589 = vshrl.u32 %v588, 7
    %v590 = vsub.s32 %v587, %v589
    %v591 = vrot.slane %v583, %v590
    %v593 = vunpack.c.l.s4 1934713408
    %v594 = vunpack.c.0.s8 %v593
    %v595 = vlaneseq
    %v596 = vshrl.u32 %v595, 7
    %v597 = vsub.s32 %v594, %v596
    %v598 = vrot.slane %v584, %v597
    %v599 = vcombine.low %v534, %v550
    %v600 = vcombine.high %v534, %v550
    %v602 = vunpack.c.l.s4 1934713408
    %v603 = vunpack.c.0.s8 %v602
    %v604 = vlaneseq
    %v605 = vshrl.u32 %v604, 7
    %v606 = vsub.s32 %v603, %v605
    %v607 = vrot.slane %v599, %v606
    %v609 = vunpack.c.l.s4 1934713408
    %v610 = vunpack.c.0.s8 %v609
    %v611 = vlaneseq
    %v612 = vshrl.u32 %v611, 7
    %v613 = vsub.s32 %v610, %v612
    %v614 = vrot.slane %v600, %v613
    %v615 = vcombine.low %v559, %v591
    %v616 = vcombine.high %v559, %v591
    %v617 = vcombine.low %v566, %v598
    %v618 = vcombine.high %v566, %v598
    %v619 = vcombine.low %v575, %v607
    %v620 = vcombine.high %v575, %v607
    %v621 = vcombine.low %v582, %v614
    %v622 = vcombine.high %v582, %v614
    %vm623 = vcmask 15360
    %v624 = vsel %vm623, %v615, -inf
    %625 = vmax.xlane.f32.xlu0 %v624
    %v626 = vpop.xlane.xlu0 %625
    %v627 = vsel %vm623, %v616, -inf
    %628 = vmax.xlane.f32.xlu0 %v627
    %v629 = vpop.xlane.xlu0 %628
    %v630 = vsel %vm623, %v617, -inf
    %631 = vmax.xlane.f32.xlu0 %v630
    %v632 = vpop.xlane.xlu0 %631
    %v633 = vsel %vm623, %v618, -inf
    %634 = vmax.xlane.f32.xlu0 %v633
    %v635 = vpop.xlane.xlu0 %634
    %v636 = vsel %vm623, %v619, -inf
    %637 = vmax.xlane.f32.xlu0 %v636
    %v638 = vpop.xlane.xlu0 %637
    %v639 = vsel %vm623, %v620, -inf
    %640 = vmax.xlane.f32.xlu0 %v639
    %v641 = vpop.xlane.xlu0 %640
    %v642 = vsel %vm623, %v621, -inf
    %643 = vmax.xlane.f32.xlu0 %v642
    %v644 = vpop.xlane.xlu0 %643
    %v645 = vsel %vm623, %v622, -inf
    %646 = vmax.xlane.f32.xlu0 %v645
    %v647 = vpop.xlane.xlu0 %646
    %v656 = vlaneseq
    %v657 = vand.u32 %v656, 127
    %v658 = vlaneseq
    %v659 = vshrl.u32 %v658, 7
    %v660 = vsub.s32 %v657, %v659
    %v661 = vrot.slane %v626, %v660
    %v662 = vlaneseq
    %v663 = vshrl.u32 %v662, 7
    %v664 = vsub.s32 %v657, %v663
    %v665 = vrot.slane %v629, %v664
    %v666 = vlaneseq
    %v667 = vshrl.u32 %v666, 7
    %v668 = vsub.s32 %v657, %v667
    %v669 = vrot.slane %v632, %v668
    %v670 = vlaneseq
    %v671 = vshrl.u32 %v670, 7
    %v672 = vsub.s32 %v657, %v671
    %v673 = vrot.slane %v635, %v672
    %v674 = vlaneseq
    %v675 = vshrl.u32 %v674, 7
    %v676 = vsub.s32 %v657, %v675
    %v677 = vrot.slane %v638, %v676
    %v678 = vlaneseq
    %v679 = vshrl.u32 %v678, 7
    %v680 = vsub.s32 %v657, %v679
    %v681 = vrot.slane %v641, %v680
    %v682 = vlaneseq
    %v683 = vshrl.u32 %v682, 7
    %v684 = vsub.s32 %v657, %v683
    %v685 = vrot.slane %v644, %v684
    %v686 = vlaneseq
    %v687 = vshrl.u32 %v686, 7
    %v688 = vsub.s32 %v657, %v687
    %v689 = vrot.slane %v647, %v688
    %vm690 = vcmask 1041409
    %v691 = vsel %vm690, %v665, %v661
    %vm692 = vcmask 1042434
    %v693 = vsel %vm692, %v669, %v691
    %vm694 = vcmask 1043459
    %v695 = vsel %vm694, %v673, %v693
    %vm696 = vcmask 1044484
    %v697 = vsel %vm696, %v677, %v695
    %vm698 = vcmask 1045509
    %v699 = vsel %vm698, %v681, %v697
    %vm700 = vcmask 1046534
    %v701 = vsel %vm700, %v685, %v699
    %vm702 = vcmask 1047559
    %v703 = vsel %vm702, %v689, %v701
    %705 = vst.msk [vmem:[#allocation3] sm:$0xff] %vm147, %v703
    %707 = vrot.lane.b32.xlu0 %v140, 112
    %v708 = vpop.permute.xlu0 %707
    %v710 = vsel %vm143, %v708, 0.0
    %711 = vadd.xlane.f32.xlu0 %v710
    %v712 = vpop.xlane.xlu0 %711
    %713 = vmatprep.subr.mxu0 0.0
    %714 = vmatpush1.msra.mxu0 0.0
    %715 = vmatprep.subr.mxu0 0.0
    %716 = vmatpush1.msra.mxu0 0.0
    %717 = vmatprep.subr.mxu0 0.0
    %718 = vmatpush1.msra.mxu0 0.0
    %719 = vmatprep.subr.mxu0 0.0
    %720 = vmatpush1.msra.mxu0 0.0
    %721 = vmatprep.subr.mxu0 0.0
    %722 = vmatpush1.msra.mxu0 0.0
    %723 = vmatprep.subr.mxu0 0.0
    %724 = vmatpush1.msra.mxu0 0.0
    %725 = vmatprep.subr.mxu0 0.0
    %726 = vmatpush1.msra.mxu0 0.0
    %727 = vmatprep.subr.mxu0 0.0
    %728 = vmatpush1.msra.mxu0 0.0
    %729 = vmatprep.subr.mxu0 0.0
    %730 = vmatpush1.msra.mxu0 0.0
    %731 = vmatprep.subr.mxu0 0.0
    %732 = vmatpush1.msra.mxu0 0.0
    %733 = vmatprep.subr.mxu0 0.0
    %734 = vmatpush1.msra.mxu0 0.0
    %735 = vmatprep.subr.mxu0 0.0
    %736 = vmatpush1.msra.mxu0 0.0
    %737 = vmatprep.subr.mxu0 0.0
    %738 = vmatpush1.msra.mxu0 0.0
    %739 = vmatprep.subr.mxu0 0.0
    %740 = vmatpush1.msra.mxu0 0.0
    %741 = vmatprep.subr.mxu0 0.0
    %742 = vmatpush1.msra.mxu0 0.0
    %743 = vmatprep.subr.mxu0 0.0
    %744 = vmatpush1.msra.mxu0 %v712
    %745 = vmatprep.subr.mxu0 0.0
    %746 = vmatpush2.msra.mxu0 0.0
    %747 = vmatprep.subr.mxu0 0.0
    %748 = vmatpush2.msra.mxu0 0.0
    %749 = vmatprep.subr.mxu0 0.0
    %750 = vmatpush2.msra.mxu0 0.0
    %751 = vmatprep.subr.mxu0 0.0
    %752 = vmatpush2.msra.mxu0 0.0
    %753 = vmatprep.subr.mxu0 0.0
    %754 = vmatpush2.msra.mxu0 0.0
    %755 = vmatprep.subr.mxu0 0.0
    %756 = vmatpush2.msra.mxu0 0.0
    %757 = vmatprep.subr.mxu0 0.0
    %758 = vmatpush2.msra.mxu0 0.0
    %759 = vmatprep.subr.mxu0 0.0
    %760 = vmatpush2.msra.mxu0 0.0
    %761 = vmatprep.subr.mxu0 0.0
    %762 = vmatpush2.msra.mxu0 0.0
    %763 = vmatprep.subr.mxu0 0.0
    %764 = vmatpush2.msra.mxu0 0.0
    %765 = vmatprep.subr.mxu0 0.0
    %766 = vmatpush2.msra.mxu0 0.0
    %767 = vmatprep.subr.mxu0 0.0
    %768 = vmatpush2.msra.mxu0 0.0
    %769 = vmatprep.subr.mxu0 0.0
    %770 = vmatpush2.msra.mxu0 0.0
    %771 = vmatprep.subr.mxu0 0.0
    %772 = vmatpush2.msra.mxu0 0.0
    %773 = vmatprep.subr.mxu0 0.0
    %774 = vmatpush2.msra.mxu0 0.0
    %775 = vmatprep.subr.mxu0 0.0
    %776 = vmatpush2.msra.mxu0 0.0
    %777 = vmatprep.mubr.f32.mxu0 0.0
    %778 = vmatmul.mubr.f32.gmra.mxu0 %v149
    %v779 = vpop.f32.mrf.mxu0
    %v780 = vadd.f32 0.0, %v779
    %v781 = vpop.f32.mrf.mxu0
    %782 = vdwg.mxu0
    %783 = vmatprep.subr.mxu0 0.0
    %784 = vmatpush1.msra.mxu0 0.0
    %785 = vmatprep.subr.mxu0 0.0
    %786 = vmatpush1.msra.mxu0 0.0
    %787 = vmatprep.subr.mxu0 0.0
    %788 = vmatpush1.msra.mxu0 0.0
    %789 = vmatprep.subr.mxu0 0.0
    %790 = vmatpush1.msra.mxu0 0.0
    %791 = vmatprep.subr.mxu0 0.0
    %792 = vmatpush1.msra.mxu0 0.0
    %793 = vmatprep.subr.mxu0 0.0
    %794 = vmatpush1.msra.mxu0 0.0
    %795 = vmatprep.subr.mxu0 0.0
    %796 = vmatpush1.msra.mxu0 0.0
    %797 = vmatprep.subr.mxu0 0.0
    %798 = vmatpush1.msra.mxu0 0.0
    %799 = vmatprep.subr.mxu0 0.0
    %800 = vmatpush1.msra.mxu0 0.0
    %801 = vmatprep.subr.mxu0 0.0
    %802 = vmatpush1.msra.mxu0 0.0
    %803 = vmatprep.subr.mxu0 0.0
    %804 = vmatpush1.msra.mxu0 0.0
    %805 = vmatprep.subr.mxu0 0.0
    %806 = vmatpush1.msra.mxu0 0.0
    %807 = vmatprep.subr.mxu0 0.0
    %808 = vmatpush1.msra.mxu0 0.0
    %809 = vmatprep.subr.mxu0 0.0
    %810 = vmatpush1.msra.mxu0 0.0
    %811 = vmatprep.subr.mxu0 0.0
    %812 = vmatpush1.msra.mxu0 0.0
    %813 = vmatprep.subr.mxu0 0.0
    %814 = vmatpush1.msra.mxu0 %v780
    %815 = vmatprep.subr.mxu0 0.0
    %816 = vmatpush2.msra.mxu0 0.0
    %817 = vmatprep.subr.mxu0 0.0
    %818 = vmatpush2.msra.mxu0 0.0
    %819 = vmatprep.subr.mxu0 0.0
    %820 = vmatpush2.msra.mxu0 0.0
    %821 = vmatprep.subr.mxu0 0.0
    %822 = vmatpush2.msra.mxu0 0.0
    %823 = vmatprep.subr.mxu0 0.0
    %824 = vmatpush2.msra.mxu0 0.0
    %825 = vmatprep.subr.mxu0 0.0
    %826 = vmatpush2.msra.mxu0 0.0
    %827 = vmatprep.subr.mxu0 0.0
    %828 = vmatpush2.msra.mxu0 0.0
    %829 = vmatprep.subr.mxu0 0.0
    %830 = vmatpush2.msra.mxu0 0.0
    %831 = vmatprep.subr.mxu0 0.0
    %832 = vmatpush2.msra.mxu0 0.0
    %833 = vmatprep.subr.mxu0 0.0
    %834 = vmatpush2.msra.mxu0 0.0
    %835 = vmatprep.subr.mxu0 0.0
    %836 = vmatpush2.msra.mxu0 0.0
    %837 = vmatprep.subr.mxu0 0.0
    %838 = vmatpush2.msra.mxu0 0.0
    %839 = vmatprep.subr.mxu0 0.0
    %840 = vmatpush2.msra.mxu0 0.0
    %841 = vmatprep.subr.mxu0 0.0
    %842 = vmatpush2.msra.mxu0 0.0
    %843 = vmatprep.subr.mxu0 0.0
    %844 = vmatpush2.msra.mxu0 0.0
    %845 = vmatprep.subr.mxu0 0.0
    %846 = vmatpush2.msra.mxu0 0.0
    %847 = vmatprep.mubr.f32.mxu0 0.0
    %848 = vmatmul.mubr.f32.gmra.mxu0 %v222
    %v849 = vpop.f32.mrf.mxu0
    %v850 = vadd.f32 0.0, %v849
    %v851 = vpop.f32.mrf.mxu0
    %852 = vdwg.mxu0
    %v853 = vmul.f32 %v850, 0.0625
    %855 = vset.pattern.permute.xlu0 0
    %856 = vperm.xlu0 %855, %v853
    %v857 = vpop.permute.xlu0 %856
    %v859 = vsub.f32 %v140, %v857
    %v860 = vmul.f32 %v859, %v859
    %862 = vrot.lane.b32.xlu0 %v860, 112
    %v863 = vpop.permute.xlu0 %862
    %v865 = vsel %vm143, %v863, 0.0
    %866 = vadd.xlane.f32.xlu0 %v865
    %v867 = vpop.xlane.xlu0 %866
    %868 = vmatprep.subr.mxu0 0.0
    %869 = vmatpush1.msra.mxu0 0.0
    %870 = vmatprep.subr.mxu0 0.0
    %871 = vmatpush1.msra.mxu0 0.0
    %872 = vmatprep.subr.mxu0 0.0
    %873 = vmatpush1.msra.mxu0 0.0
    %874 = vmatprep.subr.mxu0 0.0
    %875 = vmatpush1.msra.mxu0 0.0
    %876 = vmatprep.subr.mxu0 0.0
    %877 = vmatpush1.msra.mxu0 0.0
    %878 = vmatprep.subr.mxu0 0.0
    %879 = vmatpush1.msra.mxu0 0.0
    %880 = vmatprep.subr.mxu0 0.0
    %881 = vmatpush1.msra.mxu0 0.0
    %882 = vmatprep.subr.mxu0 0.0
    %883 = vmatpush1.msra.mxu0 0.0
    %884 = vmatprep.subr.mxu0 0.0
    %885 = vmatpush1.msra.mxu0 0.0
    %886 = vmatprep.subr.mxu0 0.0
    %887 = vmatpush1.msra.mxu0 0.0
    %888 = vmatprep.subr.mxu0 0.0
    %889 = vmatpush1.msra.mxu0 0.0
    %890 = vmatprep.subr.mxu0 0.0
    %891 = vmatpush1.msra.mxu0 0.0
    %892 = vmatprep.subr.mxu0 0.0
    %893 = vmatpush1.msra.mxu0 0.0
    %894 = vmatprep.subr.mxu0 0.0
    %895 = vmatpush1.msra.mxu0 0.0
    %896 = vmatprep.subr.mxu0 0.0
    %897 = vmatpush1.msra.mxu0 0.0
    %898 = vmatprep.subr.mxu0 0.0
    %899 = vmatpush1.msra.mxu0 %v867
    %900 = vmatprep.subr.mxu0 0.0
    %901 = vmatpush2.msra.mxu0 0.0
    %902 = vmatprep.subr.mxu0 0.0
    %903 = vmatpush2.msra.mxu0 0.0
    %904 = vmatprep.subr.mxu0 0.0
    %905 = vmatpush2.msra.mxu0 0.0
    %906 = vmatprep.subr.mxu0 0.0
    %907 = vmatpush2.msra.mxu0 0.0
    %908 = vmatprep.subr.mxu0 0.0
    %909 = vmatpush2.msra.mxu0 0.0
    %910 = vmatprep.subr.mxu0 0.0
    %911 = vmatpush2.msra.mxu0 0.0
    %912 = vmatprep.subr.mxu0 0.0
    %913 = vmatpush2.msra.mxu0 0.0
    %914 = vmatprep.subr.mxu0 0.0
    %915 = vmatpush2.msra.mxu0 0.0
    %916 = vmatprep.subr.mxu0 0.0
    %917 = vmatpush2.msra.mxu0 0.0
    %918 = vmatprep.subr.mxu0 0.0
    %919 = vmatpush2.msra.mxu0 0.0
    %920 = vmatprep.subr.mxu0 0.0
    %921 = vmatpush2.msra.mxu0 0.0
    %922 = vmatprep.subr.mxu0 0.0
    %923 = vmatpush2.msra.mxu0 0.0
    %924 = vmatprep.subr.mxu0 0.0
    %925 = vmatpush2.msra.mxu0 0.0
    %926 = vmatprep.subr.mxu0 0.0
    %927 = vmatpush2.msra.mxu0 0.0
    %928 = vmatprep.subr.mxu0 0.0
    %929 = vmatpush2.msra.mxu0 0.0
    %930 = vmatprep.subr.mxu0 0.0
    %931 = vmatpush2.msra.mxu0 0.0
    %932 = vmatprep.mubr.f32.mxu0 0.0
    %933 = vmatmul.mubr.f32.gmra.mxu0 %v149
    %v934 = vpop.f32.mrf.mxu0
    %v935 = vadd.f32 0.0, %v934
    %v936 = vpop.f32.mrf.mxu0
    %937 = vdwg.mxu0
    %v938 = vmul.f32 %v935, 0.0625
    %v939 = vadd.f32 %v938, 1e-05
    %v940 = vrsqrt.pop %v939
    %941 = vmatprep.subr.mxu0 0.0
    %942 = vmatpush1.msra.mxu0 0.0
    %943 = vmatprep.subr.mxu0 0.0
    %944 = vmatpush1.msra.mxu0 0.0
    %945 = vmatprep.subr.mxu0 0.0
    %946 = vmatpush1.msra.mxu0 0.0
    %947 = vmatprep.subr.mxu0 0.0
    %948 = vmatpush1.msra.mxu0 0.0
    %949 = vmatprep.subr.mxu0 0.0
    %950 = vmatpush1.msra.mxu0 0.0
    %951 = vmatprep.subr.mxu0 0.0
    %952 = vmatpush1.msra.mxu0 0.0
    %953 = vmatprep.subr.mxu0 0.0
    %954 = vmatpush1.msra.mxu0 0.0
    %955 = vmatprep.subr.mxu0 0.0
    %956 = vmatpush1.msra.mxu0 0.0
    %957 = vmatprep.subr.mxu0 0.0
    %958 = vmatpush1.msra.mxu0 0.0
    %959 = vmatprep.subr.mxu0 0.0
    %960 = vmatpush1.msra.mxu0 0.0
    %961 = vmatprep.subr.mxu0 0.0
    %962 = vmatpush1.msra.mxu0 0.0
    %963 = vmatprep.subr.mxu0 0.0
    %964 = vmatpush1.msra.mxu0 0.0
    %965 = vmatprep.subr.mxu0 0.0
    %966 = vmatpush1.msra.mxu0 0.0
    %967 = vmatprep.subr.mxu0 0.0
    %968 = vmatpush1.msra.mxu0 0.0
    %969 = vmatprep.subr.mxu0 0.0
    %970 = vmatpush1.msra.mxu0 0.0
    %971 = vmatprep.subr.mxu0 0.0
    %972 = vmatpush1.msra.mxu0 %v940
    %973 = vmatprep.subr.mxu0 0.0
    %974 = vmatpush2.msra.mxu0 0.0
    %975 = vmatprep.subr.mxu0 0.0
    %976 = vmatpush2.msra.mxu0 0.0
    %977 = vmatprep.subr.mxu0 0.0
    %978 = vmatpush2.msra.mxu0 0.0
    %979 = vmatprep.subr.mxu0 0.0
    %980 = vmatpush2.msra.mxu0 0.0
    %981 = vmatprep.subr.mxu0 0.0
    %982 = vmatpush2.msra.mxu0 0.0
    %983 = vmatprep.subr.mxu0 0.0
    %984 = vmatpush2.msra.mxu0 0.0
    %985 = vmatprep.subr.mxu0 0.0
    %986 = vmatpush2.msra.mxu0 0.0
    %987 = vmatprep.subr.mxu0 0.0
    %988 = vmatpush2.msra.mxu0 0.0
    %989 = vmatprep.subr.mxu0 0.0
    %990 = vmatpush2.msra.mxu0 0.0
    %991 = vmatprep.subr.mxu0 0.0
    %992 = vmatpush2.msra.mxu0 0.0
    %993 = vmatprep.subr.mxu0 0.0
    %994 = vmatpush2.msra.mxu0 0.0
    %995 = vmatprep.subr.mxu0 0.0
    %996 = vmatpush2.msra.mxu0 0.0
    %997 = vmatprep.subr.mxu0 0.0
    %998 = vmatpush2.msra.mxu0 0.0
    %999 = vmatprep.subr.mxu0 0.0
    %1000 = vmatpush2.msra.mxu0 0.0
    %1001 = vmatprep.subr.mxu0 0.0
    %1002 = vmatpush2.msra.mxu0 0.0
    %1003 = vmatprep.subr.mxu0 0.0
    %1004 = vmatpush2.msra.mxu0 0.0
    %1005 = vmatprep.mubr.f32.mxu0 0.0
    %1006 = vmatmul.mubr.f32.gmra.mxu0 %v222
    %v1007 = vpop.f32.mrf.mxu0
    %v1008 = vadd.f32 0.0, %v1007
    %v1009 = vpop.f32.mrf.mxu0
    %1010 = vdwg.mxu0
    %v1011 = vmul.f32 %v37, %v1008
    %1013 = vset.pattern.permute.xlu0 0
    %1014 = vperm.xlu0 %1013, %v1011
    %v1015 = vpop.permute.xlu0 %1014
    %v1017 = vmul.f32 %v859, %v1015
    %v1018 = vadd.f32 %v1017, %v458
    %vm1019 = vcmp.ge.f32.partialorder %v1018, 0.0
    %v1020 = vmul.f32 %v462, %v1018
    %v1021 = vsel %vm1019, %v1018, %v1020
    %1023 = vrot.lane.b32.xlu0 %v1021, 126
    %v1024 = vpop.permute.xlu0 %1023
    %1025 = vrot.lane.b32.xlu0 %v1021, 124
    %v1026 = vpop.permute.xlu0 %1025
    %1027 = vrot.lane.b32.xlu0 %v1021, 122
    %v1028 = vpop.permute.xlu0 %1027
    %1029 = vrot.lane.b32.xlu0 %v1021, 120
    %v1030 = vpop.permute.xlu0 %1029
    %1031 = vrot.lane.b32.xlu0 %v1021, 118
    %v1032 = vpop.permute.xlu0 %1031
    %1033 = vrot.lane.b32.xlu0 %v1021, 116
    %v1034 = vpop.permute.xlu0 %1033
    %1035 = vrot.lane.b32.xlu0 %v1021, 114
    %v1036 = vpop.permute.xlu0 %1035
    %1037 = vrot.lane.b32.xlu0 %v1021, 112
    %v1038 = vpop.permute.xlu0 %1037
    %1039 = vrot.lane.b32.xlu0 %v1024, 112
    %v1040 = vpop.permute.xlu0 %1039
    %1041 = vrot.lane.b32.xlu0 %v1026, 112
    %v1042 = vpop.permute.xlu0 %1041
    %1043 = vrot.lane.b32.xlu0 %v1028, 112
    %v1044 = vpop.permute.xlu0 %1043
    %1045 = vrot.lane.b32.xlu0 %v1030, 112
    %v1046 = vpop.permute.xlu0 %1045
    %1047 = vrot.lane.b32.xlu0 %v1032, 112
    %v1048 = vpop.permute.xlu0 %1047
    %1049 = vrot.lane.b32.xlu0 %v1034, 112
    %v1050 = vpop.permute.xlu0 %1049
    %1051 = vrot.lane.b32.xlu0 %v1036, 112
    %v1052 = vpop.permute.xlu0 %1051
    %v1061 = vcombine.low %v1038, %v1042
    %v1062 = vcombine.high %v1038, %v1042
    %v1064 = vunpack.c.l.s4 1983009808
    %v1065 = vunpack.c.0.s8 %v1064
    %v1066 = vlaneseq
    %v1067 = vshrl.u32 %v1066, 7
    %v1068 = vsub.s32 %v1065, %v1067
    %v1069 = vrot.slane %v1061, %v1068
    %v1071 = vunpack.c.l.s4 1983009808
    %v1072 = vunpack.c.0.s8 %v1071
    %v1073 = vlaneseq
    %v1074 = vshrl.u32 %v1073, 7
    %v1075 = vsub.s32 %v1072, %v1074
    %v1076 = vrot.slane %v1062, %v1075
    %v1077 = vcombine.low %v1040, %v1044
    %v1078 = vcombine.high %v1040, %v1044
    %v1080 = vunpack.c.l.s4 1983009808
    %v1081 = vunpack.c.0.s8 %v1080
    %v1082 = vlaneseq
    %v1083 = vshrl.u32 %v1082, 7
    %v1084 = vsub.s32 %v1081, %v1083
    %v1085 = vrot.slane %v1077, %v1084
    %v1087 = vunpack.c.l.s4 1983009808
    %v1088 = vunpack.c.0.s8 %v1087
    %v1089 = vlaneseq
    %v1090 = vshrl.u32 %v1089, 7
    %v1091 = vsub.s32 %v1088, %v1090
    %v1092 = vrot.slane %v1078, %v1091
    %v1093 = vcombine.low %v1046, %v1050
    %v1094 = vcombine.high %v1046, %v1050
    %v1096 = vunpack.c.l.s4 1983009808
    %v1097 = vunpack.c.0.s8 %v1096
    %v1098 = vlaneseq
    %v1099 = vshrl.u32 %v1098, 7
    %v1100 = vsub.s32 %v1097, %v1099
    %v1101 = vrot.slane %v1093, %v1100
    %v1103 = vunpack.c.l.s4 1983009808
    %v1104 = vunpack.c.0.s8 %v1103
    %v1105 = vlaneseq
    %v1106 = vshrl.u32 %v1105, 7
    %v1107 = vsub.s32 %v1104, %v1106
    %v1108 = vrot.slane %v1094, %v1107
    %v1109 = vcombine.low %v1048, %v1052
    %v1110 = vcombine.high %v1048, %v1052
    %v1112 = vunpack.c.l.s4 1983009808
    %v1113 = vunpack.c.0.s8 %v1112
    %v1114 = vlaneseq
    %v1115 = vshrl.u32 %v1114, 7
    %v1116 = vsub.s32 %v1113, %v1115
    %v1117 = vrot.slane %v1109, %v1116
    %v1119 = vunpack.c.l.s4 1983009808
    %v1120 = vunpack.c.0.s8 %v1119
    %v1121 = vlaneseq
    %v1122 = vshrl.u32 %v1121, 7
    %v1123 = vsub.s32 %v1120, %v1122
    %v1124 = vrot.slane %v1110, %v1123
    %v1125 = vcombine.low %v1069, %v1085
    %v1126 = vcombine.high %v1069, %v1085
    %v1128 = vunpack.c.l.s4 1934713408
    %v1129 = vunpack.c.0.s8 %v1128
    %v1130 = vlaneseq
    %v1131 = vshrl.u32 %v1130, 7
    %v1132 = vsub.s32 %v1129, %v1131
    %v1133 = vrot.slane %v1125, %v1132
    %v1135 = vunpack.c.l.s4 1934713408
    %v1136 = vunpack.c.0.s8 %v1135
    %v1137 = vlaneseq
    %v1138 = vshrl.u32 %v1137, 7
    %v1139 = vsub.s32 %v1136, %v1138
    %v1140 = vrot.slane %v1126, %v1139
    %v1141 = vcombine.low %v1076, %v1092
    %v1142 = vcombine.high %v1076, %v1092
    %v1144 = vunpack.c.l.s4 1934713408
    %v1145 = vunpack.c.0.s8 %v1144
    %v1146 = vlaneseq
    %v1147 = vshrl.u32 %v1146, 7
    %v1148 = vsub.s32 %v1145, %v1147
    %v1149 = vrot.slane %v1141, %v1148
    %v1151 = vunpack.c.l.s4 1934713408
    %v1152 = vunpack.c.0.s8 %v1151
    %v1153 = vlaneseq
    %v1154 = vshrl.u32 %v1153, 7
    %v1155 = vsub.s32 %v1152, %v1154
    %v1156 = vrot.slane %v1142, %v1155
    %v1157 = vcombine.low %v1101, %v1117
    %v1158 = vcombine.high %v1101, %v1117
    %v1160 = vunpack.c.l.s4 1934713408
    %v1161 = vunpack.c.0.s8 %v1160
    %v1162 = vlaneseq
    %v1163 = vshrl.u32 %v1162, 7
    %v1164 = vsub.s32 %v1161, %v1163
    %v1165 = vrot.slane %v1157, %v1164
    %v1167 = vunpack.c.l.s4 1934713408
    %v1168 = vunpack.c.0.s8 %v1167
    %v1169 = vlaneseq
    %v1170 = vshrl.u32 %v1169, 7
    %v1171 = vsub.s32 %v1168, %v1170
    %v1172 = vrot.slane %v1158, %v1171
    %v1173 = vcombine.low %v1108, %v1124
    %v1174 = vcombine.high %v1108, %v1124
    %v1176 = vunpack.c.l.s4 1934713408
    %v1177 = vunpack.c.0.s8 %v1176
    %v1178 = vlaneseq
    %v1179 = vshrl.u32 %v1178, 7
    %v1180 = vsub.s32 %v1177, %v1179
    %v1181 = vrot.slane %v1173, %v1180
    %v1183 = vunpack.c.l.s4 1934713408
    %v1184 = vunpack.c.0.s8 %v1183
    %v1185 = vlaneseq
    %v1186 = vshrl.u32 %v1185, 7
    %v1187 = vsub.s32 %v1184, %v1186
    %v1188 = vrot.slane %v1174, %v1187
    %v1189 = vcombine.low %v1133, %v1165
    %v1190 = vcombine.high %v1133, %v1165
    %v1191 = vcombine.low %v1140, %v1172
    %v1192 = vcombine.high %v1140, %v1172
    %v1193 = vcombine.low %v1149, %v1181
    %v1194 = vcombine.high %v1149, %v1181
    %v1195 = vcombine.low %v1156, %v1188
    %v1196 = vcombine.high %v1156, %v1188
    %v1197 = vsel %vm623, %v1189, -inf
    %1198 = vmax.xlane.f32.xlu0 %v1197
    %v1199 = vpop.xlane.xlu0 %1198
    %v1200 = vsel %vm623, %v1190, -inf
    %1201 = vmax.xlane.f32.xlu0 %v1200
    %v1202 = vpop.xlane.xlu0 %1201
    %v1203 = vsel %vm623, %v1191, -inf
    %1204 = vmax.xlane.f32.xlu0 %v1203
    %v1205 = vpop.xlane.xlu0 %1204
    %v1206 = vsel %vm623, %v1192, -inf
    %1207 = vmax.xlane.f32.xlu0 %v1206
    %v1208 = vpop.xlane.xlu0 %1207
    %v1209 = vsel %vm623, %v1193, -inf
    %1210 = vmax.xlane.f32.xlu0 %v1209
    %v1211 = vpop.xlane.xlu0 %1210
    %v1212 = vsel %vm623, %v1194, -inf
    %1213 = vmax.xlane.f32.xlu0 %v1212
    %v1214 = vpop.xlane.xlu0 %1213
    %v1215 = vsel %vm623, %v1195, -inf
    %1216 = vmax.xlane.f32.xlu0 %v1215
    %v1217 = vpop.xlane.xlu0 %1216
    %v1218 = vsel %vm623, %v1196, -inf
    %1219 = vmax.xlane.f32.xlu0 %v1218
    %v1220 = vpop.xlane.xlu0 %1219
    %v1229 = vadd.s32 %v657, 4294967288
    %v1230 = vlaneseq
    %v1231 = vshrl.u32 %v1230, 7
    %v1232 = vsub.s32 %v1229, %v1231
    %v1233 = vrot.slane %v1199, %v1232
    %v1234 = vlaneseq
    %v1235 = vshrl.u32 %v1234, 7
    %v1236 = vsub.s32 %v1229, %v1235
    %v1237 = vrot.slane %v1202, %v1236
    %v1238 = vlaneseq
    %v1239 = vshrl.u32 %v1238, 7
    %v1240 = vsub.s32 %v1229, %v1239
    %v1241 = vrot.slane %v1205, %v1240
    %v1242 = vlaneseq
    %v1243 = vshrl.u32 %v1242, 7
    %v1244 = vsub.s32 %v1229, %v1243
    %v1245 = vrot.slane %v1208, %v1244
    %v1246 = vlaneseq
    %v1247 = vshrl.u32 %v1246, 7
    %v1248 = vsub.s32 %v1229, %v1247
    %v1249 = vrot.slane %v1211, %v1248
    %v1250 = vlaneseq
    %v1251 = vshrl.u32 %v1250, 7
    %v1252 = vsub.s32 %v1229, %v1251
    %v1253 = vrot.slane %v1214, %v1252
    %v1254 = vlaneseq
    %v1255 = vshrl.u32 %v1254, 7
    %v1256 = vsub.s32 %v1229, %v1255
    %v1257 = vrot.slane %v1217, %v1256
    %v1258 = vlaneseq
    %v1259 = vshrl.u32 %v1258, 7
    %v1260 = vsub.s32 %v1229, %v1259
    %v1261 = vrot.slane %v1220, %v1260
    %v1262 = vsel %vm690, %v1237, %v1233
    %v1263 = vsel %vm692, %v1241, %v1262
    %v1264 = vsel %vm694, %v1245, %v1263
    %v1265 = vsel %vm696, %v1249, %v1264
    %v1266 = vsel %vm698, %v1253, %v1265
    %v1267 = vsel %vm700, %v1257, %v1266
    %v1268 = vsel %vm702, %v1261, %v1267
    %vm1270 = vcmask 130112
    %1271 = vst.msk [vmem:[#allocation3] sm:$0xff] %vm1270, %v1268
    // Predicated region
    $region38: #{tpu_custom_call.1} parent=1 // pred_check
      _
    $region39: #{tpu_custom_call.1} parent=1 // pred_check_branch
      %1273 = sbr.rel (0) target = $region41
    $region40: #{tpu_custom_call.1} parent=1 // pred_region
      %s1275 = ssub.s32 128, 128
      %1276 = vsyncadd [#allocation4], %s1275
      %s1278 = sshll.u32 [#allocation3], 4
      %s1279 = int_to_ptr.vmem [resolvable:$true] %s1278
      %1281 = dma.vmem_to_hbm [thread:$0]  %s1279, 128, %s9, [#allocation4]
    $region41: #{tpu_custom_call.1} parent=1 // pred_fallthru
      _
    // Predicated region
    $region42: #{tpu_custom_call.1} parent=1 // pred_check
      _
    $region43: #{tpu_custom_call.1} parent=1 // pred_check_branch
      %1283 = sbr.rel (0) target = $region45
    $region44: #{tpu_custom_call.1} parent=1 // pred_region
      %1284 = dma.done [#allocation4], 128
    $region45: #{tpu_custom_call.1} parent=1 // pred_fallthru
      _
    %1285 = vsyncpa [#allocation4], 1

</llo_original>
